<compile_context>
chip_gen: v7x
topology: tpu7x:2x2x1
jax: 0.10.0
libtpu: 0.0.40
codegen_flags: <defaults>
</compile_context>

<pallas_src>
import jax
import jax.numpy as jnp
from jax.experimental import pallas as pl
from jax.experimental.pallas import tpu as pltpu

LANE = 128
SUBLANE = 8


def _round_up(x, m):
    return (x + m - 1) // m * m


def make_onlstm_kernel(n_chunk, ngrp, h_pad):
    N, NG, Hp = n_chunk, ngrp, h_pad

    def kernel(x_ref, hx_ref, cx_ref, wx_ref, wh_ref, b_ref, cmat_ref,
               hy_ref, cy_ref):
        mm_dt = wx_ref.dtype
        # Fused gate pre-activations: two MXU dots (split K over x / hx) plus
        # an f32 bias broadcast.  Activation tiles arrive in f32 and are cast
        # to the matmul dtype in-register (no extra HBM pass in the wrapper).
        gates = (jnp.dot(x_ref[...].astype(mm_dt), wx_ref[...],
                         preferred_element_type=jnp.float32)
                 + jnp.dot(hx_ref[...].astype(mm_dt), wh_ref[...],
                           preferred_element_type=jnp.float32)
                 + b_ref[...])

        # All slice offsets below are multiples of 128 lanes (vreg aligned).
        ncf = gates[:, 0:NG]                              # cin | cforget | pad
        out_g = gates[:, NG:NG + Hp]
        cell_g = gates[:, NG + Hp:NG + 2 * Hp]
        in_g = gates[:, NG + 2 * Hp:NG + 3 * Hp]
        fgt_g = gates[:, NG + 3 * Hp:NG + 4 * Hp]

        # cummax(v) = cumsum(softmax(v)) followed by per-chunk broadcast.
        # cin occupies lanes [0,N), cforget lanes [N,2N) of the same group.
        # Mask each segment, stack along SUBLANES, do one masked softmax and
        # one f32 matmul against a (NG, Hp) matrix whose rows [0,N) implement
        # the cin cumsum/expand and rows [N,2N) the cforget one.
        lane = jax.lax.broadcasted_iota(jnp.int32, ncf.shape, 1)
        neg = jnp.float32(-1e30)
        cin_m = jnp.where(lane < N, ncf, neg)
        cfg_m = jnp.where((lane >= N) & (lane < 2 * N), ncf, neg)
        stacked = jnp.concatenate([cin_m, cfg_m], axis=0)  # (2*TB, NG)
        z = stacked - jnp.max(stacked, axis=-1, keepdims=True)
        e = jnp.exp(z)
        sm = e / jnp.sum(e, axis=-1, keepdims=True)        # exact reciprocal
        cum = jnp.dot(sm, cmat_ref[...],
                      preferred_element_type=jnp.float32)  # (2*TB, Hp), f32
        tb = ncf.shape[0]
        cingate = 1.0 - cum[:tb]
        cforgetgate = cum[tb:]

        ingate = jax.nn.sigmoid(in_g)
        forgetgate = jax.nn.sigmoid(fgt_g)
        cell = jnp.tanh(cell_g)
        outgate = jax.nn.sigmoid(out_g)

        overlap = cforgetgate * cingate
        forgetgate = forgetgate * overlap + (cforgetgate - overlap)
        ingate = ingate * overlap + (cingate - overlap)

        cy = forgetgate * cx_ref[...] + ingate * cell
        hy_ref[...] = (outgate * jnp.tanh(cy)).astype(hy_ref.dtype)
        cy_ref[...] = cy.astype(cy_ref.dtype)

    return kernel


def onlstm_cell_forward(x, hx, cx, params, *, input_size, hidden_size,
                        chunk_size, matmul_dtype=jnp.bfloat16,
                        batch_block=None):
    """x: (B, I), hx: (B, H), cx: (B, n_chunk, chunk_size) -> (hy, cy)."""
    B = x.shape[0]
    I, H = input_size, hidden_size
    N = H // chunk_size
    Hp = _round_up(H, LANE)
    NG = _round_up(2 * N, LANE)          # cin+cforget packed in one group
    Gp = NG + 4 * Hp

    w_ih, b_ih, w_hh, b_hh = params      # torch layout: (G, in), (G,)
    bias = (b_ih + b_hh).astype(jnp.float32)

    # Scatter torch gate columns [cin(N), cforget(N), out(H), cell(H), in(H),
    # forget(H)] into the 128-lane-aligned fused layout [cin|cforget pad(NG),
    # out(Hp), cell(Hp), in(Hp), forget(Hp)].  Padded columns are zero; the
    # kernel's lane masks make them irrelevant for the softmax group.
    def fuse_weight(w):
        wt = w.T.astype(jnp.float32)                       # (in_dim, G)
        cols = [jnp.pad(wt[:, 0:2 * N], ((0, 0), (0, NG - 2 * N)))]
        for k in range(4):
            cols.append(jnp.pad(wt[:, 2 * N + k * H:2 * N + (k + 1) * H],
                                ((0, 0), (0, Hp - H))))
        return jnp.concatenate(cols, axis=1).astype(matmul_dtype)

    wx = fuse_weight(w_ih)                                 # (I, Gp)
    wh = fuse_weight(w_hh)                                 # (H, Gp)
    b_cols = [jnp.pad(bias[0:2 * N], (0, NG - 2 * N))]
    for k in range(4):
        b_cols.append(jnp.pad(bias[2 * N + k * H:2 * N + (k + 1) * H],
                              (0, Hp - H)))
    b_fused = jnp.concatenate(b_cols).reshape(1, Gp)       # f32 (1, Gp)

    # cumsum + per-chunk-expand matrix, kept in f32 (accuracy of the cummax
    # gates); rows [0,N) serve the cin layout, rows [N,2N) the cforget layout.
    triu = jnp.triu(jnp.ones((N, N), jnp.float32))
    expand = jnp.kron(jnp.eye(N, dtype=jnp.float32),
                      jnp.ones((1, chunk_size), jnp.float32))   # (N, H)
    te = triu @ expand
    cmat = jnp.zeros((NG, Hp), jnp.float32)
    cmat = cmat.at[0:N, 0:H].set(te).at[N:2 * N, 0:H].set(te)

    # ---- batch tile / VMEM budget (generation aware) ----
    mm_b = jnp.dtype(matmul_dtype).itemsize
    const_bytes = (I + H) * Gp * mm_b + Gp * 4 + NG * Hp * 4

    def tile_bytes(tb):
        act_in = tb * (I + H + Hp) * 4                     # x, hx, cx (f32)
        outs = 2 * tb * Hp * 4                             # hy, cy
        temps = tb * Gp * 4 + 6 * tb * NG * 4 + 14 * tb * Hp * 4
        return 2 * (act_in + outs) + temps                 # double-buffered io

    try:
        info = pltpu.get_tpu_info()
        vmem_cap = int(getattr(info, "vmem_capacity_bytes", 0)) or (64 << 20)
    except Exception:
        vmem_cap = 64 << 20                                # v7x-safe default
    budget = vmem_cap * 85 // 100                          # headroom for Mosaic

    if batch_block is not None:
        TB = _round_up(batch_block, SUBLANE)
    else:
        # >=2 grid steps when the batch permits (feeds both v7x TCs); up to
        # 512 rows/tile on the 128-MiB-VMEM generations for fewer grid steps.
        TB = min(512, max(SUBLANE, _round_up((B + 1) // 2, SUBLANE)))
    while TB > SUBLANE and const_bytes + tile_bytes(TB) > budget:
        TB = max(SUBLANE, _round_up(TB // 2, SUBLANE))
    Bp = _round_up(B, TB)

    vmem_limit = int(min(max(2 * const_bytes + tile_bytes(TB) + (4 << 20),
                             16 << 20), budget))

    x32 = x.astype(jnp.float32)
    hx32 = hx.astype(jnp.float32)
    cx32 = cx.reshape(B, H).astype(jnp.float32)
    if Bp != B:
        x32 = jnp.pad(x32, ((0, Bp - B), (0, 0)))
        hx32 = jnp.pad(hx32, ((0, Bp - B), (0, 0)))
    if Bp != B or Hp != H:
        cx32 = jnp.pad(cx32, ((0, Bp - B), (0, Hp - H)))

    kernel = make_onlstm_kernel(N, NG, Hp)

    def run(single_buffer_consts):
        const_kw = ({"pipeline_mode": pl.Buffered(1)}
                    if single_buffer_consts else {})
        return pl.pallas_call(
            kernel,
            grid=(Bp // TB,),
            in_specs=[
                pl.BlockSpec((TB, I), lambda i: (i, 0)),
                pl.BlockSpec((TB, H), lambda i: (i, 0)),
                pl.BlockSpec((TB, Hp), lambda i: (i, 0)),
                pl.BlockSpec((I, Gp), lambda i: (0, 0), **const_kw),
                pl.BlockSpec((H, Gp), lambda i: (0, 0), **const_kw),
                pl.BlockSpec((1, Gp), lambda i: (0, 0), **const_kw),
                pl.BlockSpec((NG, Hp), lambda i: (0, 0), **const_kw),
            ],
            out_specs=(
                pl.BlockSpec((TB, Hp), lambda i: (i, 0)),
                pl.BlockSpec((TB, Hp), lambda i: (i, 0)),
            ),
            out_shape=(
                jax.ShapeDtypeStruct((Bp, Hp), jnp.float32),
                jax.ShapeDtypeStruct((Bp, Hp), jnp.float32),
            ),
            compiler_params=pltpu.CompilerParams(
                dimension_semantics=("parallel",),
                vmem_limit_bytes=vmem_limit),
        )(x32, hx32, cx32, wx, wh, b_fused, cmat)

    try:
        hy_p, cy_p = run(True)
    except Exception:
        # Fallback: default double-buffering of the constant operands.
        hy_p, cy_p = run(False)

    hy = hy_p[:B, :H]
    cy = cy_p[:B, :H].reshape(B, N, chunk_size)
    return hy, cy


def onlstm_cell_reference(x, hx, cx, params, *, hidden_size, chunk_size):
    """Pure-JAX f32 reference mirroring the PyTorch forward."""
    H = hidden_size
    N = H // chunk_size
    w_ih, b_ih, w_hh, b_hh = params
    gates = x @ w_ih.T + b_ih + hx @ w_hh.T + b_hh
    cingate, cforgetgate = gates[:, :N], gates[:, N:2 * N]
    rest = gates[:, 2 * N:].reshape(-1, 4 * N, chunk_size)
    outgate, cell, ingate, forgetgate = (rest[:, :N], rest[:, N:2 * N],
                                         rest[:, 2 * N:3 * N], rest[:, 3 * N:])

    def cummax(v):
        return jnp.cumsum(jax.nn.softmax(v, axis=-1), axis=-1)

    cingate = 1.0 - cummax(cingate)
    cforgetgate = cummax(cforgetgate)
    cingate = cingate[:, :, None]
    cforgetgate = cforgetgate[:, :, None]
    ingate = jax.nn.sigmoid(ingate)
    forgetgate = jax.nn.sigmoid(forgetgate)
    cell = jnp.tanh(cell)
    outgate = jax.nn.sigmoid(outgate)
    overlap = cforgetgate * cingate
    forgetgate = forgetgate * overlap + (cforgetgate - overlap)
    ingate = ingate * overlap + (cingate - overlap)
    cy = forgetgate * cx + ingate * cell
    hy = outgate * jnp.tanh(cy)
    return hy.reshape(-1, H), cy


def _make_params(key, input_size, hidden_size, chunk_size):
    n_chunk = hidden_size // chunk_size
    G = 4 * hidden_size + 2 * n_chunk
    k = jax.random.split(key, 4)
    b_ih = 1.0 / float(input_size) ** 0.5
    b_hh = 1.0 / float(hidden_size) ** 0.5
    w_ih = jax.random.uniform(k[0], (G, input_size), jnp.float32, -b_ih, b_ih)
    bi = jax.random.uniform(k[1], (G,), jnp.float32, -b_ih, b_ih)
    w_hh = jax.random.uniform(k[2], (G, hidden_size), jnp.float32, -b_hh, b_hh)
    bh = jax.random.uniform(k[3], (G,), jnp.float32, -b_hh, b_hh)
    return (w_ih, bi, w_hh, bh)


if __name__ == "__main__":
    key = jax.random.PRNGKey(0)

    def run_case(case_key, B, I, H, C, matmul_dtype, batch_block, tol):
        kp, kx, kh, kc = jax.random.split(case_key, 4)
        N = H // C
        params = _make_params(kp, I, H, C)
        x = jax.random.normal(kx, (B, I), jnp.float32)
        hx = jax.random.normal(kh, (B, H), jnp.float32)
        cx = jax.random.normal(kc, (B, N, C), jnp.float32)
        hy, cy = onlstm_cell_forward(x, hx, cx, params, input_size=I,
                                     hidden_size=H, chunk_size=C,
                                     matmul_dtype=matmul_dtype,
                                     batch_block=batch_block)
        jax.block_until_ready((hy, cy))
        hy_ref, cy_ref = onlstm_cell_reference(x, hx, cx, params,
                                               hidden_size=H, chunk_size=C)
        assert hy.shape == (B, H) and cy.shape == (B, N, C)
        assert jnp.allclose(hy, hy_ref, atol=tol, rtol=tol), \
            float(jnp.max(jnp.abs(hy - hy_ref)))
        assert jnp.allclose(cy, cy_ref, atol=tol, rtol=tol), \
            float(jnp.max(jnp.abs(cy - cy_ref)))

    k1, k2, k3, k4 = jax.random.split(key, 4)
    # f32 matmul path, single batch tile.
    run_case(k1, B=8, I=16, H=32, C=4, matmul_dtype=jnp.float32,
             batch_block=None, tol=2e-2)
    # bf16 matmul path (recommended on v6e/v7x); cummax matmul stays f32.
    run_case(k2, B=8, I=16, H=32, C=4, matmul_dtype=jnp.bfloat16,
             batch_block=None, tol=5e-2)
    # Auto batch tiling: B=24 -> TB=16, 2 parallel grid steps.
    run_case(k3, B=24, I=16, H=64, C=8, matmul_dtype=jnp.float32,
             batch_block=None, tol=2e-2)
    # Explicit small batch block: 3 grid steps, H padded to 128 lanes.
    run_case(k4, B=24, I=16, H=64, C=8, matmul_dtype=jnp.float32,
             batch_block=8, tol=2e-2)

    print("KERNEL_OK")
</pallas_src>

<mosaic_0001>
module attributes {stable_mosaic.version = 11 : i64} {
  func.func @kernel(%arg0: i32, %arg1: memref<8x16xf32, #tpu.memory_space<vmem>>, %arg2: memref<8x32xf32, #tpu.memory_space<vmem>>, %arg3: memref<8x128xf32, #tpu.memory_space<vmem>>, %arg4: memref<16x640xf32, #tpu.memory_space<vmem>>, %arg5: memref<32x640xf32, #tpu.memory_space<vmem>>, %arg6: memref<1x640xf32, #tpu.memory_space<vmem>>, %arg7: memref<128x128xf32, #tpu.memory_space<vmem>>, %arg8: memref<8x128xf32, #tpu.memory_space<vmem>>, %arg9: memref<8x128xf32, #tpu.memory_space<vmem>>) attributes {dimension_semantics = [#tpu.dimension_semantics<parallel>], iteration_bounds = array<i64: 1>, scalar_prefetch = 0 : i64, scratch_operands = 0 : i64, tpu.core_type = #tpu.core_type<tc>, window_params = [{transform_indices = @transform_0, window_bounds = array<i64: 8, 16>}, {transform_indices = @transform_1, window_bounds = array<i64: 8, 32>}, {transform_indices = @transform_2, window_bounds = array<i64: 8, 128>}, {pipeline_mode = #tpu.pipeline_mode<synchronous>, transform_indices = @transform_3, window_bounds = array<i64: 16, 640>}, {pipeline_mode = #tpu.pipeline_mode<synchronous>, transform_indices = @transform_4, window_bounds = array<i64: 32, 640>}, {pipeline_mode = #tpu.pipeline_mode<synchronous>, transform_indices = @transform_5, window_bounds = array<i64: 1, 640>}, {pipeline_mode = #tpu.pipeline_mode<synchronous>, transform_indices = @transform_6, window_bounds = array<i64: 128, 128>}, {transform_indices = @transform_7, window_bounds = array<i64: 8, 128>}, {transform_indices = @transform_8, window_bounds = array<i64: 8, 128>}]} {
    %c0 = arith.constant 0 : index
    %c0_0 = arith.constant 0 : index
    %0 = vector.load %arg1[%c0, %c0_0] : memref<8x16xf32, #tpu.memory_space<vmem>>, vector<8x16xf32>
    %c0_1 = arith.constant 0 : index
    %c0_2 = arith.constant 0 : index
    %1 = vector.load %arg4[%c0_1, %c0_2] : memref<16x640xf32, #tpu.memory_space<vmem>>, vector<16x640xf32>
    %cst = arith.constant dense<0.000000e+00> : vector<8x640xf32>
    %2 = tpu.matmul %0, %1, %cst {dimension_numbers = #tpu.dot_dimension_numbers<[1], [0], [0], [1], [0, 0, 1, 1], [], []>} : vector<8x16xf32>, vector<16x640xf32>, vector<8x640xf32> -> vector<8x640xf32>
    %c0_3 = arith.constant 0 : index
    %c0_4 = arith.constant 0 : index
    %3 = vector.load %arg2[%c0_3, %c0_4] : memref<8x32xf32, #tpu.memory_space<vmem>>, vector<8x32xf32>
    %c0_5 = arith.constant 0 : index
    %c0_6 = arith.constant 0 : index
    %4 = vector.load %arg5[%c0_5, %c0_6] : memref<32x640xf32, #tpu.memory_space<vmem>>, vector<32x640xf32>
    %cst_7 = arith.constant dense<0.000000e+00> : vector<8x640xf32>
    %5 = tpu.matmul %3, %4, %cst_7 {dimension_numbers = #tpu.dot_dimension_numbers<[1], [0], [0], [1], [0, 0, 1, 1], [], []>} : vector<8x32xf32>, vector<32x640xf32>, vector<8x640xf32> -> vector<8x640xf32>
    %6 = arith.addf %2, %5 : vector<8x640xf32>
    %c0_8 = arith.constant 0 : index
    %c0_9 = arith.constant 0 : index
    %7 = vector.load %arg6[%c0_8, %c0_9] : memref<1x640xf32, #tpu.memory_space<vmem>>, vector<1x640xf32>
    %8 = vector.broadcast %7 : vector<1x640xf32> to vector<8x640xf32>
    %9 = arith.addf %6, %8 : vector<8x640xf32>
    %10 = vector.extract_strided_slice %9 {offsets = [0, 0], sizes = [8, 128], strides = [1, 1]} : vector<8x640xf32> to vector<8x128xf32>
    %11 = vector.extract_strided_slice %9 {offsets = [0, 128], sizes = [8, 128], strides = [1, 1]} : vector<8x640xf32> to vector<8x128xf32>
    %12 = vector.extract_strided_slice %9 {offsets = [0, 256], sizes = [8, 128], strides = [1, 1]} : vector<8x640xf32> to vector<8x128xf32>
    %13 = vector.extract_strided_slice %9 {offsets = [0, 384], sizes = [8, 128], strides = [1, 1]} : vector<8x640xf32> to vector<8x128xf32>
    %14 = vector.extract_strided_slice %9 {offsets = [0, 512], sizes = [8, 128], strides = [1, 1]} : vector<8x640xf32> to vector<8x128xf32>
    %15 = tpu.iota {dimensions = array<i32: 1>} : vector<8x128xi32>
    %c8_i32 = arith.constant 8 : i32
    %16 = vector.broadcast %c8_i32 : i32 to vector<8x128xi32>
    %17 = arith.cmpi slt, %15, %16 : vector<8x128xi32>
    %cst_10 = arith.constant -1.000000e+30 : f32
    %18 = vector.broadcast %cst_10 : f32 to vector<8x128xf32>
    %19 = arith.select %17, %10, %18 : vector<8x128xi1>, vector<8x128xf32>
    %c8_i32_11 = arith.constant 8 : i32
    %20 = vector.broadcast %c8_i32_11 : i32 to vector<8x128xi32>
    %21 = arith.cmpi sge, %15, %20 : vector<8x128xi32>
    %c16_i32 = arith.constant 16 : i32
    %22 = vector.broadcast %c16_i32 : i32 to vector<8x128xi32>
    %23 = arith.cmpi slt, %15, %22 : vector<8x128xi32>
    %24 = arith.andi %21, %23 : vector<8x128xi1>
    %cst_12 = arith.constant -1.000000e+30 : f32
    %25 = vector.broadcast %cst_12 : f32 to vector<8x128xf32>
    %26 = arith.select %24, %10, %25 : vector<8x128xi1>, vector<8x128xf32>
    %27 = tpu.concatenate %19, %26 in 0 : vector<8x128xf32>, vector<8x128xf32> -> vector<16x128xf32>
    %cst_13 = arith.constant dense<0xFF800000> : vector<16xf32>
    %28 = vector.multi_reduction <maximumf>, %27, %cst_13 [1] : vector<16x128xf32> to vector<16xf32>
    %29 = vector.shape_cast %28 : vector<16xf32> to vector<16x1xf32>
    %30 = vector.broadcast %29 : vector<16x1xf32> to vector<16x128xf32>
    %31 = arith.subf %27, %30 : vector<16x128xf32>
    %32 = math.exp %31 : vector<16x128xf32>
    %cst_14 = arith.constant dense<0.000000e+00> : vector<16xf32>
    %33 = vector.multi_reduction <add>, %32, %cst_14 [1] : vector<16x128xf32> to vector<16xf32>
    %34 = vector.shape_cast %33 : vector<16xf32> to vector<16x1xf32>
    %35 = vector.broadcast %34 : vector<16x1xf32> to vector<16x128xf32>
    %36 = arith.divf %32, %35 : vector<16x128xf32>
    %c0_15 = arith.constant 0 : index
    %c0_16 = arith.constant 0 : index
    %37 = vector.load %arg7[%c0_15, %c0_16] : memref<128x128xf32, #tpu.memory_space<vmem>>, vector<128x128xf32>
    %cst_17 = arith.constant dense<0.000000e+00> : vector<16x128xf32>
    %38 = tpu.matmul %36, %37, %cst_17 {dimension_numbers = #tpu.dot_dimension_numbers<[1], [0], [0], [1], [0, 0, 1, 1], [], []>} : vector<16x128xf32>, vector<128x128xf32>, vector<16x128xf32> -> vector<16x128xf32>
    %39 = vector.extract_strided_slice %38 {offsets = [0, 0], sizes = [8, 128], strides = [1, 1]} : vector<16x128xf32> to vector<8x128xf32>
    %cst_18 = arith.constant 1.000000e+00 : f32
    %40 = vector.broadcast %cst_18 : f32 to vector<8x128xf32>
    %41 = arith.subf %40, %39 : vector<8x128xf32>
    %42 = vector.extract_strided_slice %38 {offsets = [8, 0], sizes = [8, 128], strides = [1, 1]} : vector<16x128xf32> to vector<8x128xf32>
    %43 = arith.negf %13 : vector<8x128xf32>
    %44 = math.exp %43 : vector<8x128xf32>
    %cst_19 = arith.constant 1.000000e+00 : f32
    %45 = vector.broadcast %cst_19 : f32 to vector<8x128xf32>
    %46 = arith.addf %45, %44 : vector<8x128xf32>
    %47 = arith.divf %45, %46 : vector<8x128xf32>
    %48 = arith.negf %14 : vector<8x128xf32>
    %49 = math.exp %48 : vector<8x128xf32>
    %cst_20 = arith.constant 1.000000e+00 : f32
    %50 = vector.broadcast %cst_20 : f32 to vector<8x128xf32>
    %51 = arith.addf %50, %49 : vector<8x128xf32>
    %52 = arith.divf %50, %51 : vector<8x128xf32>
    %53 = math.tanh %12 : vector<8x128xf32>
    %54 = arith.negf %11 : vector<8x128xf32>
    %55 = math.exp %54 : vector<8x128xf32>
    %cst_21 = arith.constant 1.000000e+00 : f32
    %56 = vector.broadcast %cst_21 : f32 to vector<8x128xf32>
    %57 = arith.addf %56, %55 : vector<8x128xf32>
    %58 = arith.divf %56, %57 : vector<8x128xf32>
    %59 = arith.mulf %42, %41 : vector<8x128xf32>
    %60 = arith.mulf %52, %59 : vector<8x128xf32>
    %61 = arith.subf %42, %59 : vector<8x128xf32>
    %62 = arith.addf %60, %61 : vector<8x128xf32>
    %63 = arith.mulf %47, %59 : vector<8x128xf32>
    %64 = arith.subf %41, %59 : vector<8x128xf32>
    %65 = arith.addf %63, %64 : vector<8x128xf32>
    %c0_22 = arith.constant 0 : index
    %c0_23 = arith.constant 0 : index
    %66 = vector.load %arg3[%c0_22, %c0_23] : memref<8x128xf32, #tpu.memory_space<vmem>>, vector<8x128xf32>
    %67 = arith.mulf %62, %66 : vector<8x128xf32>
    %68 = arith.mulf %65, %53 : vector<8x128xf32>
    %69 = arith.addf %67, %68 : vector<8x128xf32>
    %70 = math.tanh %69 : vector<8x128xf32>
    %71 = arith.mulf %58, %70 : vector<8x128xf32>
    %c0_24 = arith.constant 0 : index
    %c0_25 = arith.constant 0 : index
    %72 = vector.load %arg8[%c0_24, %c0_25] : memref<8x128xf32, #tpu.memory_space<vmem>>, vector<8x128xf32>
    tpu.vector_store %arg8[%c0_24, %c0_25], %71 {strides = array<i32>} : memref<8x128xf32, #tpu.memory_space<vmem>>, vector<8x128xf32>,
    %c0_26 = arith.constant 0 : index
    %c0_27 = arith.constant 0 : index
    %73 = vector.load %arg9[%c0_26, %c0_27] : memref<8x128xf32, #tpu.memory_space<vmem>>, vector<8x128xf32>
    tpu.vector_store %arg9[%c0_26, %c0_27], %69 {strides = array<i32>} : memref<8x128xf32, #tpu.memory_space<vmem>>, vector<8x128xf32>,
    return
  }
  func.func @transform_0(%arg0: i32) -> (i32, i32) {
    %c0_i32 = arith.constant 0 : i32
    %c0_i32_0 = arith.constant 0 : i32
    return %arg0, %c0_i32 : i32, i32
  }
  func.func @transform_1(%arg0: i32) -> (i32, i32) {
    %c0_i32 = arith.constant 0 : i32
    %c0_i32_0 = arith.constant 0 : i32
    return %arg0, %c0_i32 : i32, i32
  }
  func.func @transform_2(%arg0: i32) -> (i32, i32) {
    %c0_i32 = arith.constant 0 : i32
    %c0_i32_0 = arith.constant 0 : i32
    return %arg0, %c0_i32 : i32, i32
  }
  func.func @transform_3(%arg0: i32) -> (i32, i32) {
    %c0_i32 = arith.constant 0 : i32
    %c0_i32_0 = arith.constant 0 : i32
    %c0_i32_1 = arith.constant 0 : i32
    return %c0_i32, %c0_i32_0 : i32, i32
  }
  func.func @transform_4(%arg0: i32) -> (i32, i32) {
    %c0_i32 = arith.constant 0 : i32
    %c0_i32_0 = arith.constant 0 : i32
    %c0_i32_1 = arith.constant 0 : i32
    return %c0_i32, %c0_i32_0 : i32, i32
  }
  func.func @transform_5(%arg0: i32) -> (i32, i32) {
    %c0_i32 = arith.constant 0 : i32
    %c0_i32_0 = arith.constant 0 : i32
    %c0_i32_1 = arith.constant 0 : i32
    return %c0_i32, %c0_i32_0 : i32, i32
  }
  func.func @transform_6(%arg0: i32) -> (i32, i32) {
    %c0_i32 = arith.constant 0 : i32
    %c0_i32_0 = arith.constant 0 : i32
    %c0_i32_1 = arith.constant 0 : i32
    return %c0_i32, %c0_i32_0 : i32, i32
  }
  func.func @transform_7(%arg0: i32) -> (i32, i32) {
    %c0_i32 = arith.constant 0 : i32
    %c0_i32_0 = arith.constant 0 : i32
    return %arg0, %c0_i32 : i32, i32
  }
  func.func @transform_8(%arg0: i32) -> (i32, i32) {
    %c0_i32 = arith.constant 0 : i32
    %c0_i32_0 = arith.constant 0 : i32
    return %arg0, %c0_i32 : i32, i32
  }
}

module attributes {stable_mosaic.version = 11 : i64} {
  func.func @kernel(%arg0: i32, %arg1: memref<8x16xf32, #tpu.memory_space<vmem>>, %arg2: memref<8x32xf32, #tpu.memory_space<vmem>>, %arg3: memref<8x128xf32, #tpu.memory_space<vmem>>, %arg4: memref<16x640xf32, #tpu.memory_space<vmem>>, %arg5: memref<32x640xf32, #tpu.memory_space<vmem>>, %arg6: memref<1x640xf32, #tpu.memory_space<vmem>>, %arg7: memref<128x128xf32, #tpu.memory_space<vmem>>, %arg8: memref<8x128xf32, #tpu.memory_space<vmem>>, %arg9: memref<8x128xf32, #tpu.memory_space<vmem>>) attributes {dimension_semantics = [#tpu.dimension_semantics<parallel>], iteration_bounds = array<i64: 1>, scalar_prefetch = 0 : i64, scratch_operands = 0 : i64, tpu.core_type = #tpu.core_type<tc>, window_params = [{transform_indices = @transform_0, window_bounds = array<i64: 8, 16>}, {transform_indices = @transform_1, window_bounds = array<i64: 8, 32>}, {transform_indices = @transform_2, window_bounds = array<i64: 8, 128>}, {pipeline_mode = #tpu.pipeline_mode<synchronous>, transform_indices = @transform_3, window_bounds = array<i64: 16, 640>}, {pipeline_mode = #tpu.pipeline_mode<synchronous>, transform_indices = @transform_4, window_bounds = array<i64: 32, 640>}, {pipeline_mode = #tpu.pipeline_mode<synchronous>, transform_indices = @transform_5, window_bounds = array<i64: 1, 640>}, {pipeline_mode = #tpu.pipeline_mode<synchronous>, transform_indices = @transform_6, window_bounds = array<i64: 128, 128>}, {transform_indices = @transform_7, window_bounds = array<i64: 8, 128>}, {transform_indices = @transform_8, window_bounds = array<i64: 8, 128>}]} {
    %c0 = arith.constant 0 : index
    %c0_0 = arith.constant 0 : index
    %0 = vector.load %arg1[%c0, %c0_0] : memref<8x16xf32, #tpu.memory_space<vmem>>, vector<8x16xf32>
    %c0_1 = arith.constant 0 : index
    %c0_2 = arith.constant 0 : index
    %1 = vector.load %arg4[%c0_1, %c0_2] : memref<16x640xf32, #tpu.memory_space<vmem>>, vector<16x640xf32>
    %cst = arith.constant dense<0.000000e+00> : vector<8x640xf32>
    %2 = tpu.matmul %0, %1, %cst {dimension_numbers = #tpu.dot_dimension_numbers<[1], [0], [0], [1], [0, 0, 1, 1], [], []>} : vector<8x16xf32>, vector<16x640xf32>, vector<8x640xf32> -> vector<8x640xf32>
    %c0_3 = arith.constant 0 : index
    %c0_4 = arith.constant 0 : index
    %3 = vector.load %arg2[%c0_3, %c0_4] : memref<8x32xf32, #tpu.memory_space<vmem>>, vector<8x32xf32>
    %c0_5 = arith.constant 0 : index
    %c0_6 = arith.constant 0 : index
    %4 = vector.load %arg5[%c0_5, %c0_6] : memref<32x640xf32, #tpu.memory_space<vmem>>, vector<32x640xf32>
    %cst_7 = arith.constant dense<0.000000e+00> : vector<8x640xf32>
    %5 = tpu.matmul %3, %4, %cst_7 {dimension_numbers = #tpu.dot_dimension_numbers<[1], [0], [0], [1], [0, 0, 1, 1], [], []>} : vector<8x32xf32>, vector<32x640xf32>, vector<8x640xf32> -> vector<8x640xf32>
    %6 = arith.addf %2, %5 : vector<8x640xf32>
    %c0_8 = arith.constant 0 : index
    %c0_9 = arith.constant 0 : index
    %7 = vector.load %arg6[%c0_8, %c0_9] : memref<1x640xf32, #tpu.memory_space<vmem>>, vector<1x640xf32>
    %8 = vector.broadcast %7 : vector<1x640xf32> to vector<8x640xf32>
    %9 = arith.addf %6, %8 : vector<8x640xf32>
    %10 = vector.extract_strided_slice %9 {offsets = [0, 0], sizes = [8, 128], strides = [1, 1]} : vector<8x640xf32> to vector<8x128xf32>
    %11 = vector.extract_strided_slice %9 {offsets = [0, 128], sizes = [8, 128], strides = [1, 1]} : vector<8x640xf32> to vector<8x128xf32>
    %12 = vector.extract_strided_slice %9 {offsets = [0, 256], sizes = [8, 128], strides = [1, 1]} : vector<8x640xf32> to vector<8x128xf32>
    %13 = vector.extract_strided_slice %9 {offsets = [0, 384], sizes = [8, 128], strides = [1, 1]} : vector<8x640xf32> to vector<8x128xf32>
    %14 = vector.extract_strided_slice %9 {offsets = [0, 512], sizes = [8, 128], strides = [1, 1]} : vector<8x640xf32> to vector<8x128xf32>
    %15 = tpu.iota {dimensions = array<i32: 1>} : vector<8x128xi32>
    %c8_i32 = arith.constant 8 : i32
    %16 = vector.broadcast %c8_i32 : i32 to vector<8x128xi32>
    %17 = arith.cmpi slt, %15, %16 : vector<8x128xi32>
    %cst_10 = arith.constant -1.000000e+30 : f32
    %18 = vector.broadcast %cst_10 : f32 to vector<8x128xf32>
    %19 = arith.select %17, %10, %18 : vector<8x128xi1>, vector<8x128xf32>
    %c8_i32_11 = arith.constant 8 : i32
    %20 = vector.broadcast %c8_i32_11 : i32 to vector<8x128xi32>
    %21 = arith.cmpi sge, %15, %20 : vector<8x128xi32>
    %c16_i32 = arith.constant 16 : i32
    %22 = vector.broadcast %c16_i32 : i32 to vector<8x128xi32>
    %23 = arith.cmpi slt, %15, %22 : vector<8x128xi32>
    %24 = arith.andi %21, %23 : vector<8x128xi1>
    %cst_12 = arith.constant -1.000000e+30 : f32
    %25 = vector.broadcast %cst_12 : f32 to vector<8x128xf32>
    %26 = arith.select %24, %10, %25 : vector<8x128xi1>, vector<8x128xf32>
    %27 = tpu.concatenate %19, %26 in 0 : vector<8x128xf32>, vector<8x128xf32> -> vector<16x128xf32>
    %cst_13 = arith.constant dense<0xFF800000> : vector<16xf32>
    %28 = vector.multi_reduction <maximumf>, %27, %cst_13 [1] : vector<16x128xf32> to vector<16xf32>
    %29 = vector.shape_cast %28 : vector<16xf32> to vector<16x1xf32>
    %30 = vector.broadcast %29 : vector<16x1xf32> to vector<16x128xf32>
    %31 = arith.subf %27, %30 : vector<16x128xf32>
    %32 = math.exp %31 : vector<16x128xf32>
    %cst_14 = arith.constant dense<0.000000e+00> : vector<16xf32>
    %33 = vector.multi_reduction <add>, %32, %cst_14 [1] : vector<16x128xf32> to vector<16xf32>
    %34 = vector.shape_cast %33 : vector<16xf32> to vector<16x1xf32>
    %35 = vector.broadcast %34 : vector<16x1xf32> to vector<16x128xf32>
    %36 = arith.divf %32, %35 : vector<16x128xf32>
    %c0_15 = arith.constant 0 : index
    %c0_16 = arith.constant 0 : index
    %37 = vector.load %arg7[%c0_15, %c0_16] : memref<128x128xf32, #tpu.memory_space<vmem>>, vector<128x128xf32>
    %cst_17 = arith.constant dense<0.000000e+00> : vector<16x128xf32>
    %38 = tpu.matmul %36, %37, %cst_17 {dimension_numbers = #tpu.dot_dimension_numbers<[1], [0], [0], [1], [0, 0, 1, 1], [], []>} : vector<16x128xf32>, vector<128x128xf32>, vector<16x128xf32> -> vector<16x128xf32>
    %39 = vector.extract_strided_slice %38 {offsets = [0, 0], sizes = [8, 128], strides = [1, 1]} : vector<16x128xf32> to vector<8x128xf32>
    %cst_18 = arith.constant 1.000000e+00 : f32
    %40 = vector.broadcast %cst_18 : f32 to vector<8x128xf32>
    %41 = arith.subf %40, %39 : vector<8x128xf32>
    %42 = vector.extract_strided_slice %38 {offsets = [8, 0], sizes = [8, 128], strides = [1, 1]} : vector<16x128xf32> to vector<8x128xf32>
    %43 = arith.negf %13 : vector<8x128xf32>
    %44 = math.exp %43 : vector<8x128xf32>
    %cst_19 = arith.constant 1.000000e+00 : f32
    %45 = vector.broadcast %cst_19 : f32 to vector<8x128xf32>
    %46 = arith.addf %45, %44 : vector<8x128xf32>
    %47 = arith.divf %45, %46 : vector<8x128xf32>
    %48 = arith.negf %14 : vector<8x128xf32>
    %49 = math.exp %48 : vector<8x128xf32>
    %cst_20 = arith.constant 1.000000e+00 : f32
    %50 = vector.broadcast %cst_20 : f32 to vector<8x128xf32>
    %51 = arith.addf %50, %49 : vector<8x128xf32>
    %52 = arith.divf %50, %51 : vector<8x128xf32>
    %53 = math.tanh %12 : vector<8x128xf32>
    %54 = arith.negf %11 : vector<8x128xf32>
    %55 = math.exp %54 : vector<8x128xf32>
    %cst_21 = arith.constant 1.000000e+00 : f32
    %56 = vector.broadcast %cst_21 : f32 to vector<8x128xf32>
    %57 = arith.addf %56, %55 : vector<8x128xf32>
    %58 = arith.divf %56, %57 : vector<8x128xf32>
    %59 = arith.mulf %42, %41 : vector<8x128xf32>
    %60 = arith.mulf %52, %59 : vector<8x128xf32>
    %61 = arith.subf %42, %59 : vector<8x128xf32>
    %62 = arith.addf %60, %61 : vector<8x128xf32>
    %63 = arith.mulf %47, %59 : vector<8x128xf32>
    %64 = arith.subf %41, %59 : vector<8x128xf32>
    %65 = arith.addf %63, %64 : vector<8x128xf32>
    %c0_22 = arith.constant 0 : index
    %c0_23 = arith.constant 0 : index
    %66 = vector.load %arg3[%c0_22, %c0_23] : memref<8x128xf32, #tpu.memory_space<vmem>>, vector<8x128xf32>
    %67 = arith.mulf %62, %66 : vector<8x128xf32>
    %68 = arith.mulf %65, %53 : vector<8x128xf32>
    %69 = arith.addf %67, %68 : vector<8x128xf32>
    %70 = math.tanh %69 : vector<8x128xf32>
    %71 = arith.mulf %58, %70 : vector<8x128xf32>
    %c0_24 = arith.constant 0 : index
    %c0_25 = arith.constant 0 : index
    %72 = vector.load %arg8[%c0_24, %c0_25] : memref<8x128xf32, #tpu.memory_space<vmem>>, vector<8x128xf32>
    tpu.vector_store %arg8[%c0_24, %c0_25], %71 {strides = array<i32>} : memref<8x128xf32, #tpu.memory_space<vmem>>, vector<8x128xf32>,
    %c0_26 = arith.constant 0 : index
    %c0_27 = arith.constant 0 : index
    %73 = vector.load %arg9[%c0_26, %c0_27] : memref<8x128xf32, #tpu.memory_space<vmem>>, vector<8x128xf32>
    tpu.vector_store %arg9[%c0_26, %c0_27], %69 {strides = array<i32>} : memref<8x128xf32, #tpu.memory_space<vmem>>, vector<8x128xf32>,
    return
  }
  func.func @transform_0(%arg0: i32) -> (i32, i32) {
    %c0_i32 = arith.constant 0 : i32
    %c0_i32_0 = arith.constant 0 : i32
    return %arg0, %c0_i32 : i32, i32
  }
  func.func @transform_1(%arg0: i32) -> (i32, i32) {
    %c0_i32 = arith.constant 0 : i32
    %c0_i32_0 = arith.constant 0 : i32
    return %arg0, %c0_i32 : i32, i32
  }
  func.func @transform_2(%arg0: i32) -> (i32, i32) {
    %c0_i32 = arith.constant 0 : i32
    %c0_i32_0 = arith.constant 0 : i32
    return %arg0, %c0_i32 : i32, i32
  }
  func.func @transform_3(%arg0: i32) -> (i32, i32) {
    %c0_i32 = arith.constant 0 : i32
    %c0_i32_0 = arith.constant 0 : i32
    %c0_i32_1 = arith.constant 0 : i32
    return %c0_i32, %c0_i32_0 : i32, i32
  }
  func.func @transform_4(%arg0: i32) -> (i32, i32) {
    %c0_i32 = arith.constant 0 : i32
    %c0_i32_0 = arith.constant 0 : i32
    %c0_i32_1 = arith.constant 0 : i32
    return %c0_i32, %c0_i32_0 : i32, i32
  }
  func.func @transform_5(%arg0: i32) -> (i32, i32) {
    %c0_i32 = arith.constant 0 : i32
    %c0_i32_0 = arith.constant 0 : i32
    %c0_i32_1 = arith.constant 0 : i32
    return %c0_i32, %c0_i32_0 : i32, i32
  }
  func.func @transform_6(%arg0: i32) -> (i32, i32) {
    %c0_i32 = arith.constant 0 : i32
    %c0_i32_0 = arith.constant 0 : i32
    %c0_i32_1 = arith.constant 0 : i32
    return %c0_i32, %c0_i32_0 : i32, i32
  }
  func.func @transform_7(%arg0: i32) -> (i32, i32) {
    %c0_i32 = arith.constant 0 : i32
    %c0_i32_0 = arith.constant 0 : i32
    return %arg0, %c0_i32 : i32, i32
  }
  func.func @transform_8(%arg0: i32) -> (i32, i32) {
    %c0_i32 = arith.constant 0 : i32
    %c0_i32_0 = arith.constant 0 : i32
    return %arg0, %c0_i32 : i32, i32
  }
}

</mosaic_0001>

<llo_original>
// kernel: tpu_custom_call.1
$region0: #{tpu_custom_call.1}
  #allocation0 [shape = 'u32[]', space=smem, size = 0x4, offset = 0x4, fixed_abs, tag = 'smem constant byte address 0x4 - core index']
  #allocation1 [shape = 'u32[144,128]{1,0:T(1,128)}', space=vmem, size = 0x12000, scoped, tag = 'internal scratch']
  %s0 = inlined_call_operand.hbm [shape: f32[8,16], index: 0, kind: input, shape index: {}]
  %s1 = inlined_call_operand.hbm [shape: f32[8,32], index: 1, kind: input, shape index: {}]
  %s2 = inlined_call_operand.hbm [shape: f32[8,128], index: 2, kind: input, shape index: {}]
  %s3 = inlined_call_operand.hbm [shape: f32[16,640], index: 3, kind: input, shape index: {}]
  %s4 = inlined_call_operand.hbm [shape: f32[32,640], index: 4, kind: input, shape index: {}]
  %s5 = inlined_call_operand.vmem [shape: f32[1,640], index: 5, kind: input, shape index: {}]
  %s6 = inlined_call_operand.hbm [shape: f32[128,128], index: 6, kind: input, shape index: {}]
  %s7 = inlined_call_operand.hbm [shape: f32[8,128], index: 7, kind: output, shape index: {0}]
  %s8 = inlined_call_operand.hbm [shape: f32[8,128], index: 8, kind: output, shape index: {1}]
  %9 = xla_tuple %s7, %s8
  %s10 = sld [smem:[#allocation0]]
  $region70: #{tpu_custom_call.1} parent=0
    _
  %s12 = ssub.s32 1, %s10
  %s13 = scalar_select 0, %s12, %s10
  $region1: #{tpu_custom_call.1} parent=0
    #allocation2 [shape = 'u8[4096]{0}', space=vmem, size = 0x1000, scoped, tag = 'input window, operand 0, single buffered']
    #allocation3 [shape = 's32[1]{0}', space=sflag, size = 0x4, scoped, tag = 'scoped memory for tpu_custom_call.1']
    #allocation4 [shape = 's32[1]{0}', space=sflag, size = 0x4, scoped, tag = 'scoped memory for tpu_custom_call.1']
    #allocation5 [shape = 'u8[4096]{0}', space=vmem, size = 0x1000, scoped, tag = 'input window, operand 1, single buffered']
    #allocation6 [shape = 's32[1]{0}', space=sflag, size = 0x4, scoped, tag = 'scoped memory for tpu_custom_call.1']
    #allocation7 [shape = 'u8[4096]{0}', space=vmem, size = 0x1000, scoped, tag = 'input window, operand 2, single buffered']
    #allocation8 [shape = 'u8[40960]{0}', space=vmem, size = 0xa000, scoped, tag = 'input window, operand 3, single buffered']
    #allocation9 [shape = 's32[1]{0}', space=sflag, size = 0x4, scoped, tag = 'scoped memory for tpu_custom_call.1']
    #allocation10 [shape = 'u8[81920]{0}', space=vmem, size = 0x14000, scoped, tag = 'input window, operand 4, single buffered']
    #allocation11 [shape = 'u8[65536]{0}', space=vmem, size = 0x10000, scoped, tag = 'input window, operand 6, single buffered']
    #allocation12 [shape = 's32[1]{0}', space=sflag, size = 0x4, scoped, tag = 'scoped memory for tpu_custom_call.1']
    #allocation13 [shape = 'u8[4096]{0}', space=vmem, size = 0x1000, scoped, tag = 'output window, operand 0, single buffered']
    #allocation14 [shape = 'u8[4096]{0}', space=vmem, size = 0x1000, scoped, tag = 'output window, operand 1, single buffered']
    #allocation15 [shape = 's32[1]{0}', space=sflag, size = 0x4, scoped, tag = 'scoped memory for tpu_custom_call.1']
    %14 = vsyncpa [#allocation3], 0
    %15 = vsyncpa [#allocation6], 0
    %16 = vsyncpa [#allocation9], 0
    %17 = vsyncpa [#allocation12], 0
    %18 = vsyncpa [#allocation4], 0
    %19 = vsyncpa [#allocation15], 0
    // Predicated region
    $region2: #{tpu_custom_call.1} parent=1 // pred_check
      _
    $region3: #{tpu_custom_call.1} parent=1 // pred_check_branch
      %21 = sbr.rel (0) target = $region5
    $region4: #{tpu_custom_call.1} parent=1 // pred_region
      %s23 = ssub.s32 128, 128
      %24 = vsyncadd [#allocation3], %s23
      %s26 = sshll.u32 [#allocation2], 4
      %s27 = int_to_ptr.vmem [resolvable:$true] %s26
      %29 = dma.hbm_to_vmem [thread:$0]  %s0, 128, %s27, [#allocation3]
    $region5: #{tpu_custom_call.1} parent=1 // pred_fallthru
      _
    // Predicated region
    $region6: #{tpu_custom_call.1} parent=1 // pred_check
      _
    $region7: #{tpu_custom_call.1} parent=1 // pred_check_branch
      %31 = sbr.rel (0) target = $region9
    $region8: #{tpu_custom_call.1} parent=1 // pred_region
      %s33 = ssub.s32 128, 128
      %34 = vsyncadd [#allocation6], %s33
      %s36 = sshll.u32 [#allocation5], 4
      %s37 = int_to_ptr.vmem [resolvable:$true] %s36
      %39 = dma.hbm_to_vmem [thread:$0]  %s1, 128, %s37, [#allocation6]
    $region9: #{tpu_custom_call.1} parent=1 // pred_fallthru
      _
    // Predicated region
    $region10: #{tpu_custom_call.1} parent=1 // pred_check
      _
    $region11: #{tpu_custom_call.1} parent=1 // pred_check_branch
      %41 = sbr.rel (0) target = $region13
    $region12: #{tpu_custom_call.1} parent=1 // pred_region
      %s43 = ssub.s32 128, 128
      %44 = vsyncadd [#allocation6], %s43
      %s46 = sshll.u32 [#allocation7], 4
      %s47 = int_to_ptr.vmem [resolvable:$true] %s46
      %49 = dma.hbm_to_vmem [thread:$0]  %s2, 128, %s47, [#allocation6]
    $region13: #{tpu_custom_call.1} parent=1 // pred_fallthru
      _
    // Predicated region
    $region14: #{tpu_custom_call.1} parent=1 // pred_check
      _
    $region15: #{tpu_custom_call.1} parent=1 // pred_check_branch
      %51 = sbr.rel (0) target = $region17
    $region16: #{tpu_custom_call.1} parent=1 // pred_region
      %s53 = ssub.s32 1280, 1280
      %54 = vsyncadd [#allocation9], %s53
      %s55 = sshll.u32 [#allocation8], 4
      %s56 = int_to_ptr.vmem [resolvable:$true] %s55
      %61 = dma.hbm_to_vmem [thread:$0]  %s3, 1280, %s56, [#allocation9], 640, 640, 40
    $region17: #{tpu_custom_call.1} parent=1 // pred_fallthru
      _
    // Predicated region
    $region18: #{tpu_custom_call.1} parent=1 // pred_check
      _
    $region19: #{tpu_custom_call.1} parent=1 // pred_check_branch
      %63 = sbr.rel (0) target = $region21
    $region20: #{tpu_custom_call.1} parent=1 // pred_region
      %s65 = ssub.s32 2560, 2560
      %66 = vsyncadd [#allocation9], %s65
      %s67 = sshll.u32 [#allocation10], 4
      %s68 = int_to_ptr.vmem [resolvable:$true] %s67
      %73 = dma.hbm_to_vmem [thread:$0]  %s4, 2560, %s68, [#allocation9], 640, 640, 40
    $region21: #{tpu_custom_call.1} parent=1 // pred_fallthru
      _
    // Predicated region
    $region22: #{tpu_custom_call.1} parent=1 // pred_check
      _
    $region23: #{tpu_custom_call.1} parent=1 // pred_check_branch
      %75 = sbr.rel (0) target = $region25
    $region24: #{tpu_custom_call.1} parent=1 // pred_region
      _
    $region25: #{tpu_custom_call.1} parent=1 // pred_fallthru
      _
    // Predicated region
    $region26: #{tpu_custom_call.1} parent=1 // pred_check
      _
    $region27: #{tpu_custom_call.1} parent=1 // pred_check_branch
      %77 = sbr.rel (0) target = $region29
    $region28: #{tpu_custom_call.1} parent=1 // pred_region
      %s79 = ssub.s32 2048, 2048
      %80 = vsyncadd [#allocation12], %s79
      %s81 = sshll.u32 [#allocation11], 4
      %s82 = int_to_ptr.vmem [resolvable:$true] %s81
      %87 = dma.hbm_to_vmem [thread:$0]  %s6, 2048, %s82, [#allocation12], 128, 128, 8
    $region29: #{tpu_custom_call.1} parent=1 // pred_fallthru
      _
    // Predicated region
    $region30: #{tpu_custom_call.1} parent=1 // pred_check
      _
    $region31: #{tpu_custom_call.1} parent=1 // pred_check_branch
      %89 = sbr.rel (0) target = $region33
    $region32: #{tpu_custom_call.1} parent=1 // pred_region
      %90 = dma.done [#allocation3], 128
    $region33: #{tpu_custom_call.1} parent=1 // pred_fallthru
      _
    // Predicated region
    $region34: #{tpu_custom_call.1} parent=1 // pred_check
      _
    $region35: #{tpu_custom_call.1} parent=1 // pred_check_branch
      %92 = sbr.rel (0) target = $region37
    $region36: #{tpu_custom_call.1} parent=1 // pred_region
      %93 = dma.done [#allocation6], 128
    $region37: #{tpu_custom_call.1} parent=1 // pred_fallthru
      _
    // Predicated region
    $region38: #{tpu_custom_call.1} parent=1 // pred_check
      _
    $region39: #{tpu_custom_call.1} parent=1 // pred_check_branch
      %95 = sbr.rel (0) target = $region41
    $region40: #{tpu_custom_call.1} parent=1 // pred_region
      %96 = dma.done [#allocation6], 128
    $region41: #{tpu_custom_call.1} parent=1 // pred_fallthru
      _
    // Predicated region
    $region42: #{tpu_custom_call.1} parent=1 // pred_check
      _
    $region43: #{tpu_custom_call.1} parent=1 // pred_check_branch
      %98 = sbr.rel (0) target = $region45
    $region44: #{tpu_custom_call.1} parent=1 // pred_region
      %99 = dma.done [#allocation9], 1280
    $region45: #{tpu_custom_call.1} parent=1 // pred_fallthru
      _
    // Predicated region
    $region46: #{tpu_custom_call.1} parent=1 // pred_check
      _
    $region47: #{tpu_custom_call.1} parent=1 // pred_check_branch
      %101 = sbr.rel (0) target = $region49
    $region48: #{tpu_custom_call.1} parent=1 // pred_region
      %102 = dma.done [#allocation9], 2560
    $region49: #{tpu_custom_call.1} parent=1 // pred_fallthru
      _
    // Predicated region
    $region50: #{tpu_custom_call.1} parent=1 // pred_check
      _
    $region51: #{tpu_custom_call.1} parent=1 // pred_check_branch
      %104 = sbr.rel (0) target = $region53
    $region52: #{tpu_custom_call.1} parent=1 // pred_region
      %105 = dma.done [#allocation12], 2048
    $region53: #{tpu_custom_call.1} parent=1 // pred_fallthru
      _
    %v106 = vld [vmem:[#allocation2] sm:$0xff]
    %v107 = vld [vmem:[#allocation8] sm:$0xff]
    %v108 = vld [vmem:[#allocation8 + $0x8] sm:$0xff]
    %v109 = vld [vmem:[#allocation8 + $0x10] sm:$0xff]
    %v110 = vld [vmem:[#allocation8 + $0x18] sm:$0xff]
    %v111 = vld [vmem:[#allocation8 + $0x20] sm:$0xff]
    %v112 = vld [vmem:[#allocation8 + $0x28] sm:$0xff]
    %v113 = vld [vmem:[#allocation8 + $0x30] sm:$0xff]
    %v114 = vld [vmem:[#allocation8 + $0x38] sm:$0xff]
    %v115 = vld [vmem:[#allocation8 + $0x40] sm:$0xff]
    %v116 = vld [vmem:[#allocation8 + $0x48] sm:$0xff]
    %v117 = vld [vmem:[#allocation5] sm:$0xff]
    %v118 = vld [vmem:[#allocation10] sm:$0xff]
    %v119 = vld [vmem:[#allocation10 + $0x8] sm:$0xff]
    %v120 = vld [vmem:[#allocation10 + $0x10] sm:$0xff]
    %v121 = vld [vmem:[#allocation10 + $0x18] sm:$0xff]
    %v122 = vld [vmem:[#allocation10 + $0x20] sm:$0xff]
    %v123 = vld [vmem:[#allocation10 + $0x28] sm:$0xff]
    %v124 = vld [vmem:[#allocation10 + $0x30] sm:$0xff]
    %v125 = vld [vmem:[#allocation10 + $0x38] sm:$0xff]
    %v126 = vld [vmem:[#allocation10 + $0x40] sm:$0xff]
    %v127 = vld [vmem:[#allocation10 + $0x48] sm:$0xff]
    %v128 = vld [vmem:[#allocation10 + $0x50] sm:$0xff]
    %v129 = vld [vmem:[#allocation10 + $0x58] sm:$0xff]
    %v130 = vld [vmem:[#allocation10 + $0x60] sm:$0xff]
    %v131 = vld [vmem:[#allocation10 + $0x68] sm:$0xff]
    %v132 = vld [vmem:[#allocation10 + $0x70] sm:$0xff]
    %v133 = vld [vmem:[#allocation10 + $0x78] sm:$0xff]
    %v134 = vld [vmem:[#allocation10 + $0x80] sm:$0xff]
    %v135 = vld [vmem:[#allocation10 + $0x88] sm:$0xff]
    %v136 = vld [vmem:[#allocation10 + $0x90] sm:$0xff]
    %v137 = vld [vmem:[#allocation10 + $0x98] sm:$0xff]
    %vm138 = vcmask 261120
    %v140 = vsel %vm138, %v117, 0
    %142 = vmatprep.subr.mxu0 %v119
    %143 = vmatpush1.msra.mxu0 %v118
    %144 = vmatprep.subr.mxu0 %v124
    %145 = vmatpush1.msra.mxu0 %v123
    %146 = vmatprep.subr.mxu0 %v129
    %147 = vmatpush1.msra.mxu0 %v128
    %148 = vmatprep.subr.mxu0 %v134
    %149 = vmatpush1.msra.mxu0 %v133
    %150 = vmatprep.subr.mxu0 0.0
    %151 = vmatpush1.msra.mxu0 0.0
    %152 = vmatprep.subr.mxu0 0.0
    %153 = vmatpush1.msra.mxu0 0.0
    %154 = vmatprep.subr.mxu0 0.0
    %155 = vmatpush1.msra.mxu0 0.0
    %156 = vmatprep.subr.mxu0 0.0
    %157 = vmatpush1.msra.mxu0 0.0
    %158 = vmatprep.subr.mxu0 0.0
    %159 = vmatpush1.msra.mxu0 0.0
    %160 = vmatprep.subr.mxu0 0.0
    %161 = vmatpush1.msra.mxu0 0.0
    %162 = vmatprep.subr.mxu0 0.0
    %163 = vmatpush1.msra.mxu0 0.0
    %164 = vmatprep.subr.mxu0 0.0
    %165 = vmatpush1.msra.mxu0 0.0
    %166 = vmatprep.subr.mxu0 0.0
    %167 = vmatpush1.msra.mxu0 0.0
    %168 = vmatprep.subr.mxu0 0.0
    %169 = vmatpush1.msra.mxu0 0.0
    %170 = vmatprep.subr.mxu0 0.0
    %171 = vmatpush1.msra.mxu0 0.0
    %172 = vmatprep.subr.mxu0 0.0
    %173 = vmatpush1.msra.mxu0 0.0
    %174 = vmatprep.subr.mxu0 0.0
    %175 = vmatpush1.msra.mxu0 0.0
    %176 = vmatprep.subr.mxu0 0.0
    %177 = vmatpush1.msra.mxu0 0.0
    %178 = vmatprep.subr.mxu0 0.0
    %179 = vmatpush1.msra.mxu0 0.0
    %180 = vmatprep.subr.mxu0 0.0
    %181 = vmatpush1.msra.mxu0 0.0
    %182 = vmatprep.subr.mxu0 0.0
    %183 = vmatpush1.msra.mxu0 0.0
    %184 = vmatprep.subr.mxu0 0.0
    %185 = vmatpush1.msra.mxu0 0.0
    %186 = vmatprep.subr.mxu0 0.0
    %187 = vmatpush1.msra.mxu0 0.0
    %188 = vmatprep.subr.mxu0 0.0
    %189 = vmatpush1.msra.mxu0 0.0
    %190 = vmatprep.subr.mxu0 0.0
    %191 = vmatpush1.msra.mxu0 0.0
    %192 = vmatprep.subr.mxu0 0.0
    %193 = vmatpush1.msra.mxu0 0.0
    %194 = vmatprep.subr.mxu0 0.0
    %195 = vmatpush1.msra.mxu0 0.0
    %196 = vmatprep.subr.mxu0 0.0
    %197 = vmatpush1.msra.mxu0 0.0
    %198 = vmatprep.subr.mxu0 0.0
    %199 = vmatpush1.msra.mxu0 0.0
    %200 = vmatprep.subr.mxu0 0.0
    %201 = vmatpush1.msra.mxu0 0.0
    %202 = vmatprep.subr.mxu0 0.0
    %203 = vmatpush1.msra.mxu0 0.0
    %204 = vmatprep.subr.mxu0 0.0
    %205 = vmatpush1.msra.mxu0 0.0
    %206 = vmatprep.mubr.f32.mxu0 0.0
    %207 = vmatmul.mubr.f32.gmra.mrb[0].mxu0 %v140
    %v208 = vpop.f32.mrb[0].mxu0
    %v209 = vadd.f32 0.0, %v208
    %v210 = vpop.f32.mrb[0].mxu0
    %v211 = vadd.f32 0.0, %v210
    %212 = vdwg.mxu0
    %213 = vmatprep.subr.mxu0 %v121
    %214 = vmatpush1.msra.mxu0 %v120
    %215 = vmatprep.subr.mxu0 %v126
    %216 = vmatpush1.msra.mxu0 %v125
    %217 = vmatprep.subr.mxu0 %v131
    %218 = vmatpush1.msra.mxu0 %v130
    %219 = vmatprep.subr.mxu0 %v136
    %220 = vmatpush1.msra.mxu0 %v135
    %221 = vmatprep.subr.mxu0 0.0
    %222 = vmatpush1.msra.mxu0 0.0
    %223 = vmatprep.subr.mxu0 0.0
    %224 = vmatpush1.msra.mxu0 0.0
    %225 = vmatprep.subr.mxu0 0.0
    %226 = vmatpush1.msra.mxu0 0.0
    %227 = vmatprep.subr.mxu0 0.0
    %228 = vmatpush1.msra.mxu0 0.0
    %229 = vmatprep.subr.mxu0 0.0
    %230 = vmatpush1.msra.mxu0 0.0
    %231 = vmatprep.subr.mxu0 0.0
    %232 = vmatpush1.msra.mxu0 0.0
    %233 = vmatprep.subr.mxu0 0.0
    %234 = vmatpush1.msra.mxu0 0.0
    %235 = vmatprep.subr.mxu0 0.0
    %236 = vmatpush1.msra.mxu0 0.0
    %237 = vmatprep.subr.mxu0 0.0
    %238 = vmatpush1.msra.mxu0 0.0
    %239 = vmatprep.subr.mxu0 0.0
    %240 = vmatpush1.msra.mxu0 0.0
    %241 = vmatprep.subr.mxu0 0.0
    %242 = vmatpush1.msra.mxu0 0.0
    %243 = vmatprep.subr.mxu0 0.0
    %244 = vmatpush1.msra.mxu0 0.0
    %245 = vmatprep.subr.mxu0 0.0
    %246 = vmatpush1.msra.mxu0 0.0
    %247 = vmatprep.subr.mxu0 0.0
    %248 = vmatpush1.msra.mxu0 0.0
    %249 = vmatprep.subr.mxu0 0.0
    %250 = vmatpush1.msra.mxu0 0.0
    %251 = vmatprep.subr.mxu0 0.0
    %252 = vmatpush1.msra.mxu0 0.0
    %253 = vmatprep.subr.mxu0 0.0
    %254 = vmatpush1.msra.mxu0 0.0
    %255 = vmatprep.subr.mxu0 0.0
    %256 = vmatpush1.msra.mxu0 0.0
    %257 = vmatprep.subr.mxu0 0.0
    %258 = vmatpush1.msra.mxu0 0.0
    %259 = vmatprep.subr.mxu0 0.0
    %260 = vmatpush1.msra.mxu0 0.0
    %261 = vmatprep.subr.mxu0 0.0
    %262 = vmatpush1.msra.mxu0 0.0
    %263 = vmatprep.subr.mxu0 0.0
    %264 = vmatpush1.msra.mxu0 0.0
    %265 = vmatprep.subr.mxu0 0.0
    %266 = vmatpush1.msra.mxu0 0.0
    %267 = vmatprep.subr.mxu0 0.0
    %268 = vmatpush1.msra.mxu0 0.0
    %269 = vmatprep.subr.mxu0 0.0
    %270 = vmatpush1.msra.mxu0 0.0
    %271 = vmatprep.subr.mxu0 0.0
    %272 = vmatpush1.msra.mxu0 0.0
    %273 = vmatprep.subr.mxu0 0.0
    %274 = vmatpush1.msra.mxu0 0.0
    %275 = vmatprep.subr.mxu0 0.0
    %276 = vmatpush1.msra.mxu0 0.0
    %277 = vmatprep.mubr.f32.mxu0 0.0
    %278 = vmatmul.mubr.f32.gmra.mrb[0].mxu0 %v140
    %v279 = vpop.f32.mrb[0].mxu0
    %v280 = vadd.f32 0.0, %v279
    %v281 = vpop.f32.mrb[0].mxu0
    %v282 = vadd.f32 0.0, %v281
    %283 = vdwg.mxu0
    %284 = vmatprep.subr.mxu0 0.0
    %285 = vmatpush1.msra.mxu0 %v122
    %286 = vmatprep.subr.mxu0 0.0
    %287 = vmatpush1.msra.mxu0 %v127
    %288 = vmatprep.subr.mxu0 0.0
    %289 = vmatpush1.msra.mxu0 %v132
    %290 = vmatprep.subr.mxu0 0.0
    %291 = vmatpush1.msra.mxu0 %v137
    %292 = vmatprep.subr.mxu0 0.0
    %293 = vmatpush1.msra.mxu0 0.0
    %294 = vmatprep.subr.mxu0 0.0
    %295 = vmatpush1.msra.mxu0 0.0
    %296 = vmatprep.subr.mxu0 0.0
    %297 = vmatpush1.msra.mxu0 0.0
    %298 = vmatprep.subr.mxu0 0.0
    %299 = vmatpush1.msra.mxu0 0.0
    %300 = vmatprep.subr.mxu0 0.0
    %301 = vmatpush1.msra.mxu0 0.0
    %302 = vmatprep.subr.mxu0 0.0
    %303 = vmatpush1.msra.mxu0 0.0
    %304 = vmatprep.subr.mxu0 0.0
    %305 = vmatpush1.msra.mxu0 0.0
    %306 = vmatprep.subr.mxu0 0.0
    %307 = vmatpush1.msra.mxu0 0.0
    %308 = vmatprep.subr.mxu0 0.0
    %309 = vmatpush1.msra.mxu0 0.0
    %310 = vmatprep.subr.mxu0 0.0
    %311 = vmatpush1.msra.mxu0 0.0
    %312 = vmatprep.subr.mxu0 0.0
    %313 = vmatpush1.msra.mxu0 0.0
    %314 = vmatprep.subr.mxu0 0.0
    %315 = vmatpush1.msra.mxu0 0.0
    %316 = vmatprep.subr.mxu0 0.0
    %317 = vmatpush1.msra.mxu0 0.0
    %318 = vmatprep.subr.mxu0 0.0
    %319 = vmatpush1.msra.mxu0 0.0
    %320 = vmatprep.subr.mxu0 0.0
    %321 = vmatpush1.msra.mxu0 0.0
    %322 = vmatprep.subr.mxu0 0.0
    %323 = vmatpush1.msra.mxu0 0.0
    %324 = vmatprep.subr.mxu0 0.0
    %325 = vmatpush1.msra.mxu0 0.0
    %326 = vmatprep.subr.mxu0 0.0
    %327 = vmatpush1.msra.mxu0 0.0
    %328 = vmatprep.subr.mxu0 0.0
    %329 = vmatpush1.msra.mxu0 0.0
    %330 = vmatprep.subr.mxu0 0.0
    %331 = vmatpush1.msra.mxu0 0.0
    %332 = vmatprep.subr.mxu0 0.0
    %333 = vmatpush1.msra.mxu0 0.0
    %334 = vmatprep.subr.mxu0 0.0
    %335 = vmatpush1.msra.mxu0 0.0
    %336 = vmatprep.subr.mxu0 0.0
    %337 = vmatpush1.msra.mxu0 0.0
    %338 = vmatprep.subr.mxu0 0.0
    %339 = vmatpush1.msra.mxu0 0.0
    %340 = vmatprep.subr.mxu0 0.0
    %341 = vmatpush1.msra.mxu0 0.0
    %342 = vmatprep.subr.mxu0 0.0
    %343 = vmatpush1.msra.mxu0 0.0
    %344 = vmatprep.subr.mxu0 0.0
    %345 = vmatpush1.msra.mxu0 0.0
    %346 = vmatprep.subr.mxu0 0.0
    %347 = vmatpush1.msra.mxu0 0.0
    %348 = vmatprep.mubr.f32.mxu0 0.0
    %349 = vmatmul.mubr.f32.gmra.mrb[0].mxu0 %v140
    %v350 = vpop.f32.mrb[0].mxu0
    %v351 = vadd.f32 0.0, %v350
    %v352 = vpop.f32.mrb[0].mxu0
    %353 = vdwg.mxu0
    %vm354 = vcmask 130048
    %v356 = vsel %vm354, %v106, 0
    %358 = vmatprep.subr.mxu0 %v108
    %359 = vmatpush1.msra.mxu0 %v107
    %360 = vmatprep.subr.mxu0 %v113
    %361 = vmatpush1.msra.mxu0 %v112
    %362 = vmatprep.subr.mxu0 0.0
    %363 = vmatpush1.msra.mxu0 0.0
    %364 = vmatprep.subr.mxu0 0.0
    %365 = vmatpush1.msra.mxu0 0.0
    %366 = vmatprep.subr.mxu0 0.0
    %367 = vmatpush1.msra.mxu0 0.0
    %368 = vmatprep.subr.mxu0 0.0
    %369 = vmatpush1.msra.mxu0 0.0
    %370 = vmatprep.subr.mxu0 0.0
    %371 = vmatpush1.msra.mxu0 0.0
    %372 = vmatprep.subr.mxu0 0.0
    %373 = vmatpush1.msra.mxu0 0.0
    %374 = vmatprep.subr.mxu0 0.0
    %375 = vmatpush1.msra.mxu0 0.0
    %376 = vmatprep.subr.mxu0 0.0
    %377 = vmatpush1.msra.mxu0 0.0
    %378 = vmatprep.subr.mxu0 0.0
    %379 = vmatpush1.msra.mxu0 0.0
    %380 = vmatprep.subr.mxu0 0.0
    %381 = vmatpush1.msra.mxu0 0.0
    %382 = vmatprep.subr.mxu0 0.0
    %383 = vmatpush1.msra.mxu0 0.0
    %384 = vmatprep.subr.mxu0 0.0
    %385 = vmatpush1.msra.mxu0 0.0
    %386 = vmatprep.subr.mxu0 0.0
    %387 = vmatpush1.msra.mxu0 0.0
    %388 = vmatprep.subr.mxu0 0.0
    %389 = vmatpush1.msra.mxu0 0.0
    %390 = vmatprep.subr.mxu0 0.0
    %391 = vmatpush1.msra.mxu0 0.0
    %392 = vmatprep.subr.mxu0 0.0
    %393 = vmatpush1.msra.mxu0 0.0
    %394 = vmatprep.subr.mxu0 0.0
    %395 = vmatpush1.msra.mxu0 0.0
    %396 = vmatprep.subr.mxu0 0.0
    %397 = vmatpush1.msra.mxu0 0.0
    %398 = vmatprep.subr.mxu0 0.0
    %399 = vmatpush1.msra.mxu0 0.0
    %400 = vmatprep.subr.mxu0 0.0
    %401 = vmatpush1.msra.mxu0 0.0
    %402 = vmatprep.subr.mxu0 0.0
    %403 = vmatpush1.msra.mxu0 0.0
    %404 = vmatprep.subr.mxu0 0.0
    %405 = vmatpush1.msra.mxu0 0.0
    %406 = vmatprep.subr.mxu0 0.0
    %407 = vmatpush1.msra.mxu0 0.0
    %408 = vmatprep.subr.mxu0 0.0
    %409 = vmatpush1.msra.mxu0 0.0
    %410 = vmatprep.subr.mxu0 0.0
    %411 = vmatpush1.msra.mxu0 0.0
    %412 = vmatprep.subr.mxu0 0.0
    %413 = vmatpush1.msra.mxu0 0.0
    %414 = vmatprep.subr.mxu0 0.0
    %415 = vmatpush1.msra.mxu0 0.0
    %416 = vmatprep.subr.mxu0 0.0
    %417 = vmatpush1.msra.mxu0 0.0
    %418 = vmatprep.subr.mxu0 0.0
    %419 = vmatpush1.msra.mxu0 0.0
    %420 = vmatprep.subr.mxu0 0.0
    %421 = vmatpush1.msra.mxu0 0.0
    %422 = vmatprep.mubr.f32.mxu0 0.0
    %423 = vmatmul.mubr.f32.gmra.mrb[0].mxu0 %v356
    %v424 = vpop.f32.mrb[0].mxu0
    %v425 = vadd.f32 %v209, %v424
    %v426 = vpop.f32.mrb[0].mxu0
    %v427 = vadd.f32 %v211, %v426
    %428 = vdwg.mxu0
    %429 = vmatprep.subr.mxu0 %v110
    %430 = vmatpush1.msra.mxu0 %v109
    %431 = vmatprep.subr.mxu0 %v115
    %432 = vmatpush1.msra.mxu0 %v114
    %433 = vmatprep.subr.mxu0 0.0
    %434 = vmatpush1.msra.mxu0 0.0
    %435 = vmatprep.subr.mxu0 0.0
    %436 = vmatpush1.msra.mxu0 0.0
    %437 = vmatprep.subr.mxu0 0.0
    %438 = vmatpush1.msra.mxu0 0.0
    %439 = vmatprep.subr.mxu0 0.0
    %440 = vmatpush1.msra.mxu0 0.0
    %441 = vmatprep.subr.mxu0 0.0
    %442 = vmatpush1.msra.mxu0 0.0
    %443 = vmatprep.subr.mxu0 0.0
    %444 = vmatpush1.msra.mxu0 0.0
    %445 = vmatprep.subr.mxu0 0.0
    %446 = vmatpush1.msra.mxu0 0.0
    %447 = vmatprep.subr.mxu0 0.0
    %448 = vmatpush1.msra.mxu0 0.0
    %449 = vmatprep.subr.mxu0 0.0
    %450 = vmatpush1.msra.mxu0 0.0
    %451 = vmatprep.subr.mxu0 0.0
    %452 = vmatpush1.msra.mxu0 0.0
    %453 = vmatprep.subr.mxu0 0.0
    %454 = vmatpush1.msra.mxu0 0.0
    %455 = vmatprep.subr.mxu0 0.0
    %456 = vmatpush1.msra.mxu0 0.0
    %457 = vmatprep.subr.mxu0 0.0
    %458 = vmatpush1.msra.mxu0 0.0
    %459 = vmatprep.subr.mxu0 0.0
    %460 = vmatpush1.msra.mxu0 0.0
    %461 = vmatprep.subr.mxu0 0.0
    %462 = vmatpush1.msra.mxu0 0.0
    %463 = vmatprep.subr.mxu0 0.0
    %464 = vmatpush1.msra.mxu0 0.0
    %465 = vmatprep.subr.mxu0 0.0
    %466 = vmatpush1.msra.mxu0 0.0
    %467 = vmatprep.subr.mxu0 0.0
    %468 = vmatpush1.msra.mxu0 0.0
    %469 = vmatprep.subr.mxu0 0.0
    %470 = vmatpush1.msra.mxu0 0.0
    %471 = vmatprep.subr.mxu0 0.0
    %472 = vmatpush1.msra.mxu0 0.0
    %473 = vmatprep.subr.mxu0 0.0
    %474 = vmatpush1.msra.mxu0 0.0
    %475 = vmatprep.subr.mxu0 0.0
    %476 = vmatpush1.msra.mxu0 0.0
    %477 = vmatprep.subr.mxu0 0.0
    %478 = vmatpush1.msra.mxu0 0.0
    %479 = vmatprep.subr.mxu0 0.0
    %480 = vmatpush1.msra.mxu0 0.0
    %481 = vmatprep.subr.mxu0 0.0
    %482 = vmatpush1.msra.mxu0 0.0
    %483 = vmatprep.subr.mxu0 0.0
    %484 = vmatpush1.msra.mxu0 0.0
    %485 = vmatprep.subr.mxu0 0.0
    %486 = vmatpush1.msra.mxu0 0.0
    %487 = vmatprep.subr.mxu0 0.0
    %488 = vmatpush1.msra.mxu0 0.0
    %489 = vmatprep.subr.mxu0 0.0
    %490 = vmatpush1.msra.mxu0 0.0
    %491 = vmatprep.subr.mxu0 0.0
    %492 = vmatpush1.msra.mxu0 0.0
    %493 = vmatprep.mubr.f32.mxu0 0.0
    %494 = vmatmul.mubr.f32.gmra.mrb[0].mxu0 %v356
    %v495 = vpop.f32.mrb[0].mxu0
    %v496 = vadd.f32 %v280, %v495
    %v497 = vpop.f32.mrb[0].mxu0
    %v498 = vadd.f32 %v282, %v497
    %499 = vdwg.mxu0
    %500 = vmatprep.subr.mxu0 0.0
    %501 = vmatpush1.msra.mxu0 %v111
    %502 = vmatprep.subr.mxu0 0.0
    %503 = vmatpush1.msra.mxu0 %v116
    %504 = vmatprep.subr.mxu0 0.0
    %505 = vmatpush1.msra.mxu0 0.0
    %506 = vmatprep.subr.mxu0 0.0
    %507 = vmatpush1.msra.mxu0 0.0
    %508 = vmatprep.subr.mxu0 0.0
    %509 = vmatpush1.msra.mxu0 0.0
    %510 = vmatprep.subr.mxu0 0.0
    %511 = vmatpush1.msra.mxu0 0.0
    %512 = vmatprep.subr.mxu0 0.0
    %513 = vmatpush1.msra.mxu0 0.0
    %514 = vmatprep.subr.mxu0 0.0
    %515 = vmatpush1.msra.mxu0 0.0
    %516 = vmatprep.subr.mxu0 0.0
    %517 = vmatpush1.msra.mxu0 0.0
    %518 = vmatprep.subr.mxu0 0.0
    %519 = vmatpush1.msra.mxu0 0.0
    %520 = vmatprep.subr.mxu0 0.0
    %521 = vmatpush1.msra.mxu0 0.0
    %522 = vmatprep.subr.mxu0 0.0
    %523 = vmatpush1.msra.mxu0 0.0
    %524 = vmatprep.subr.mxu0 0.0
    %525 = vmatpush1.msra.mxu0 0.0
    %526 = vmatprep.subr.mxu0 0.0
    %527 = vmatpush1.msra.mxu0 0.0
    %528 = vmatprep.subr.mxu0 0.0
    %529 = vmatpush1.msra.mxu0 0.0
    %530 = vmatprep.subr.mxu0 0.0
    %531 = vmatpush1.msra.mxu0 0.0
    %532 = vmatprep.subr.mxu0 0.0
    %533 = vmatpush1.msra.mxu0 0.0
    %534 = vmatprep.subr.mxu0 0.0
    %535 = vmatpush1.msra.mxu0 0.0
    %536 = vmatprep.subr.mxu0 0.0
    %537 = vmatpush1.msra.mxu0 0.0
    %538 = vmatprep.subr.mxu0 0.0
    %539 = vmatpush1.msra.mxu0 0.0
    %540 = vmatprep.subr.mxu0 0.0
    %541 = vmatpush1.msra.mxu0 0.0
    %542 = vmatprep.subr.mxu0 0.0
    %543 = vmatpush1.msra.mxu0 0.0
    %544 = vmatprep.subr.mxu0 0.0
    %545 = vmatpush1.msra.mxu0 0.0
    %546 = vmatprep.subr.mxu0 0.0
    %547 = vmatpush1.msra.mxu0 0.0
    %548 = vmatprep.subr.mxu0 0.0
    %549 = vmatpush1.msra.mxu0 0.0
    %550 = vmatprep.subr.mxu0 0.0
    %551 = vmatpush1.msra.mxu0 0.0
    %552 = vmatprep.subr.mxu0 0.0
    %553 = vmatpush1.msra.mxu0 0.0
    %554 = vmatprep.subr.mxu0 0.0
    %555 = vmatpush1.msra.mxu0 0.0
    %556 = vmatprep.subr.mxu0 0.0
    %557 = vmatpush1.msra.mxu0 0.0
    %558 = vmatprep.subr.mxu0 0.0
    %559 = vmatpush1.msra.mxu0 0.0
    %560 = vmatprep.subr.mxu0 0.0
    %561 = vmatpush1.msra.mxu0 0.0
    %562 = vmatprep.subr.mxu0 0.0
    %563 = vmatpush1.msra.mxu0 0.0
    %564 = vmatprep.mubr.f32.mxu0 0.0
    %565 = vmatmul.mubr.f32.gmra.mrb[0].mxu0 %v356
    %v566 = vpop.f32.mrb[0].mxu0
    %v567 = vadd.f32 %v351, %v566
    %v568 = vpop.f32.mrb[0].mxu0
    %569 = vdwg.mxu0
    %v570 = vld [vmem:[%s5] sm:$0x1f]
    %v572 = vlaneseq
    %v573 = vshrl.u32 %v572, 7
    %v574 = vsub.s32 0, %v573
    %v575 = vrot.slane %v570, %v574
    %v576 = vlaneseq
    %v577 = vshrl.u32 %v576, 7
    %v578 = vsub.s32 1, %v577
    %v579 = vrot.slane %v570, %v578
    %v580 = vlaneseq
    %v581 = vshrl.u32 %v580, 7
    %v582 = vsub.s32 2, %v581
    %v583 = vrot.slane %v570, %v582
    %v584 = vlaneseq
    %v585 = vshrl.u32 %v584, 7
    %v586 = vsub.s32 3, %v585
    %v587 = vrot.slane %v570, %v586
    %v588 = vlaneseq
    %v589 = vshrl.u32 %v588, 7
    %v590 = vsub.s32 4, %v589
    %v591 = vrot.slane %v570, %v590
    %v597 = vadd.f32 %v425, %v575
    %v598 = vadd.f32 %v427, %v579
    %v599 = vadd.f32 %v496, %v583
    %v600 = vadd.f32 %v498, %v587
    %v601 = vadd.f32 %v567, %v591
    %v602 = vlaneseq
    %v603 = vand.u32 %v602, 127
    %vm604 = vcmp.lt.s32.totalorder %v603, 8
    %v605 = vsel %vm604, %v597, -1e+30
    %vm606 = vcmp.ge.s32.totalorder %v603, 8
    %vm607 = vcmp.lt.s32.totalorder %v603, 16
    %vm608 = vmand %vm606, %vm607
    %v609 = vsel %vm608, %v597, -1e+30
    %610 = vmax.xlane.f32.xlu0 %v605
    %v611 = vpop.xlane.xlu0 %610
    %612 = vmax.xlane.f32.xlu0 %v609
    %v613 = vpop.xlane.xlu0 %612
    %v614 = vsub.f32 %v605, %v611
    %v615 = vsub.f32 %v609, %v613
    %v616 = vmul.f32 %v614, 1.442695
    %v617 = vpow.pop %v616
    %v618 = vmul.f32 %v615, 1.442695
    %v619 = vpow.pop %v618
    %620 = vadd.xlane.f32.xlu0 %v617
    %v621 = vpop.xlane.xlu0 %620
    %622 = vadd.xlane.f32.xlu0 %v619
    %v623 = vpop.xlane.xlu0 %622
    %v624 = vrcp.pop %v621
    %v625 = vmul.f32 %v617, %v624
    %v626 = vrcp.pop %v623
    %v627 = vmul.f32 %v619, %v626
    %v628 = vld [vmem:[#allocation11] sm:$0xff]
    %v629 = vld [vmem:[#allocation11 + $0x8] sm:$0xff]
    %v630 = vld [vmem:[#allocation11 + $0x10] sm:$0xff]
    %v631 = vld [vmem:[#allocation11 + $0x18] sm:$0xff]
    %v632 = vld [vmem:[#allocation11 + $0x20] sm:$0xff]
    %v633 = vld [vmem:[#allocation11 + $0x28] sm:$0xff]
    %v634 = vld [vmem:[#allocation11 + $0x30] sm:$0xff]
    %v635 = vld [vmem:[#allocation11 + $0x38] sm:$0xff]
    %v636 = vld [vmem:[#allocation11 + $0x40] sm:$0xff]
    %v637 = vld [vmem:[#allocation11 + $0x48] sm:$0xff]
    %v638 = vld [vmem:[#allocation11 + $0x50] sm:$0xff]
    %v639 = vld [vmem:[#allocation11 + $0x58] sm:$0xff]
    %v640 = vld [vmem:[#allocation11 + $0x60] sm:$0xff]
    %v641 = vld [vmem:[#allocation11 + $0x68] sm:$0xff]
    %v642 = vld [vmem:[#allocation11 + $0x70] sm:$0xff]
    %v643 = vld [vmem:[#allocation11 + $0x78] sm:$0xff]
    %644 = vmatprep.subr.mxu0 0.0
    %645 = vmatpush1.msra.mxu0 %v628
    %646 = vmatprep.subr.mxu0 0.0
    %647 = vmatpush1.msra.mxu0 %v629
    %648 = vmatprep.subr.mxu0 0.0
    %649 = vmatpush1.msra.mxu0 %v630
    %650 = vmatprep.subr.mxu0 0.0
    %651 = vmatpush1.msra.mxu0 %v631
    %652 = vmatprep.subr.mxu0 0.0
    %653 = vmatpush1.msra.mxu0 %v632
    %654 = vmatprep.subr.mxu0 0.0
    %655 = vmatpush1.msra.mxu0 %v633
    %656 = vmatprep.subr.mxu0 0.0
    %657 = vmatpush1.msra.mxu0 %v634
    %658 = vmatprep.subr.mxu0 0.0
    %659 = vmatpush1.msra.mxu0 %v635
    %660 = vmatprep.subr.mxu0 0.0
    %661 = vmatpush1.msra.mxu0 %v636
    %662 = vmatprep.subr.mxu0 0.0
    %663 = vmatpush1.msra.mxu0 %v637
    %664 = vmatprep.subr.mxu0 0.0
    %665 = vmatpush1.msra.mxu0 %v638
    %666 = vmatprep.subr.mxu0 0.0
    %667 = vmatpush1.msra.mxu0 %v639
    %668 = vmatprep.subr.mxu0 0.0
    %669 = vmatpush1.msra.mxu0 %v640
    %670 = vmatprep.subr.mxu0 0.0
    %671 = vmatpush1.msra.mxu0 %v641
    %672 = vmatprep.subr.mxu0 0.0
    %673 = vmatpush1.msra.mxu0 %v642
    %674 = vmatprep.subr.mxu0 0.0
    %675 = vmatpush1.msra.mxu0 %v643
    %676 = vmatprep.subr.mxu0 0.0
    %677 = vmatpush1.msra.mxu0 0.0
    %678 = vmatprep.subr.mxu0 0.0
    %679 = vmatpush1.msra.mxu0 0.0
    %680 = vmatprep.subr.mxu0 0.0
    %681 = vmatpush1.msra.mxu0 0.0
    %682 = vmatprep.subr.mxu0 0.0
    %683 = vmatpush1.msra.mxu0 0.0
    %684 = vmatprep.subr.mxu0 0.0
    %685 = vmatpush1.msra.mxu0 0.0
    %686 = vmatprep.subr.mxu0 0.0
    %687 = vmatpush1.msra.mxu0 0.0
    %688 = vmatprep.subr.mxu0 0.0
    %689 = vmatpush1.msra.mxu0 0.0
    %690 = vmatprep.subr.mxu0 0.0
    %691 = vmatpush1.msra.mxu0 0.0
    %692 = vmatprep.subr.mxu0 0.0
    %693 = vmatpush1.msra.mxu0 0.0
    %694 = vmatprep.subr.mxu0 0.0
    %695 = vmatpush1.msra.mxu0 0.0
    %696 = vmatprep.subr.mxu0 0.0
    %697 = vmatpush1.msra.mxu0 0.0
    %698 = vmatprep.subr.mxu0 0.0
    %699 = vmatpush1.msra.mxu0 0.0
    %700 = vmatprep.subr.mxu0 0.0
    %701 = vmatpush1.msra.mxu0 0.0
    %702 = vmatprep.subr.mxu0 0.0
    %703 = vmatpush1.msra.mxu0 0.0
    %704 = vmatprep.subr.mxu0 0.0
    %705 = vmatpush1.msra.mxu0 0.0
    %706 = vmatprep.subr.mxu0 0.0
    %707 = vmatpush1.msra.mxu0 0.0
    %708 = vmatprep.mubr.f32.mxu0 0.0
    %709 = vmatmul.mubr.f32.gmra.mrb[0].mxu0 %v625
    %v710 = vpop.f32.mrb[0].mxu0
    %v711 = vadd.f32 0.0, %v710
    %v712 = vpop.f32.mrb[0].mxu0
    %713 = vmatprep.mubr.f32.mxu0 0.0
    %714 = vmatmul.mubr.f32.gmra.mrb[0].mxu0 %v627
    %v715 = vpop.f32.mrb[0].mxu0
    %v716 = vadd.f32 0.0, %v715
    %v717 = vpop.f32.mrb[0].mxu0
    %718 = vdwg.mxu0
    %v719 = vsub.f32 1.0, %v711
    %v720 = vxor.u32 %v600, 2147483648
    %v721 = vmul.f32 %v720, 1.442695
    %v722 = vpow.pop %v721
    %v723 = vadd.f32 %v722, 1.0
    %v724 = vrcp.pop %v723
    %v725 = vmul.f32 1.0, %v724
    %v726 = vxor.u32 %v601, 2147483648
    %v727 = vmul.f32 %v726, 1.442695
    %v728 = vpow.pop %v727
    %v729 = vadd.f32 %v728, 1.0
    %v730 = vrcp.pop %v729
    %v731 = vmul.f32 1.0, %v730
    %v732 = vtanh.pop %v599
    %v733 = vxor.u32 %v598, 2147483648
    %v734 = vmul.f32 %v733, 1.442695
    %v735 = vpow.pop %v734
    %v736 = vadd.f32 %v735, 1.0
    %v737 = vrcp.pop %v736
    %v738 = vmul.f32 1.0, %v737
    %v739 = vmul.f32 %v716, %v719
    %v740 = vmul.f32 %v731, %v739
    %v741 = vsub.f32 %v716, %v739
    %v742 = vadd.f32 %v740, %v741
    %v743 = vmul.f32 %v725, %v739
    %v744 = vsub.f32 %v719, %v739
    %v745 = vadd.f32 %v743, %v744
    %v746 = vld [vmem:[#allocation7] sm:$0xff]
    %v747 = vmul.f32 %v742, %v746
    %v748 = vmul.f32 %v745, %v732
    %v749 = vadd.f32 %v747, %v748
    %v750 = vtanh.pop %v749
    %v751 = vmul.f32 %v738, %v750
    %752 = vst [vmem:[#allocation13] sm:$0xff] %v751
    %753 = vst [vmem:[#allocation14] sm:$0xff] %v749
    // Predicated region
    $region54: #{tpu_custom_call.1} parent=1 // pred_check
      _
    $region55: #{tpu_custom_call.1} parent=1 // pred_check_branch
      %755 = sbr.rel (0) target = $region57
    $region56: #{tpu_custom_call.1} parent=1 // pred_region
      %s757 = ssub.s32 128, 128
      %758 = vsyncadd [#allocation4], %s757
      %s760 = sshll.u32 [#allocation13], 4
      %s761 = int_to_ptr.vmem [resolvable:$true] %s760
      %763 = dma.vmem_to_hbm [thread:$0]  %s761, 128, %s7, [#allocation4]
    $region57: #{tpu_custom_call.1} parent=1 // pred_fallthru
      _
    // Predicated region
    $region58: #{tpu_custom_call.1} parent=1 // pred_check
      _
    $region59: #{tpu_custom_call.1} parent=1 // pred_check_branch
      %765 = sbr.rel (0) target = $region61
    $region60: #{tpu_custom_call.1} parent=1 // pred_region
      %s767 = ssub.s32 128, 128
      %768 = vsyncadd [#allocation15], %s767
      %s770 = sshll.u32 [#allocation14], 4
      %s771 = int_to_ptr.vmem [resolvable:$true] %s770
      %773 = dma.vmem_to_hbm [thread:$0]  %s771, 128, %s8, [#allocation15]
    $region61: #{tpu_custom_call.1} parent=1 // pred_fallthru
      _
    // Predicated region
    $region62: #{tpu_custom_call.1} parent=1 // pred_check
      _
    $region63: #{tpu_custom_call.1} parent=1 // pred_check_branch
      %775 = sbr.rel (0) target = $region65
    $region64: #{tpu_custom_call.1} parent=1 // pred_region
      %776 = dma.done [#allocation4], 128
    $region65: #{tpu_custom_call.1} parent=1 // pred_fallthru
      _
    // Predicated region
    $region66: #{tpu_custom_call.1} parent=1 // pred_check
      _
    $region67: #{tpu_custom_call.1} parent=1 // pred_check_branch
      %778 = sbr.rel (0) target = $region69
    $region68: #{tpu_custom_call.1} parent=1 // pred_region
      %779 = dma.done [#allocation15], 128
    $region69: #{tpu_custom_call.1} parent=1 // pred_fallthru
      _
    %780 = vsyncpa [#allocation3], 1
    %781 = vsyncpa [#allocation6], 1
    %782 = vsyncpa [#allocation9], 1
    %783 = vsyncpa [#allocation12], 1
    %784 = vsyncpa [#allocation4], 1
    %785 = vsyncpa [#allocation15], 1

// kernel: tpu_custom_call.1
$region0: #{tpu_custom_call.1}
  #allocation0 [shape = 'u32[]', space=smem, size = 0x4, offset = 0x4, fixed_abs, tag = 'smem constant byte address 0x4 - core index']
  #allocation1 [shape = 'u32[144,128]{1,0:T(1,128)}', space=vmem, size = 0x12000, scoped, tag = 'internal scratch']
  %s0 = inlined_call_operand.hbm [shape: f32[8,16], index: 0, kind: input, shape index: {}]
  %s1 = inlined_call_operand.hbm [shape: f32[8,32], index: 1, kind: input, shape index: {}]
  %s2 = inlined_call_operand.hbm [shape: f32[8,128], index: 2, kind: input, shape index: {}]
  %s3 = inlined_call_operand.hbm [shape: f32[16,640], index: 3, kind: input, shape index: {}]
  %s4 = inlined_call_operand.hbm [shape: f32[32,640], index: 4, kind: input, shape index: {}]
  %s5 = inlined_call_operand.vmem [shape: f32[1,640], index: 5, kind: input, shape index: {}]
  %s6 = inlined_call_operand.hbm [shape: f32[128,128], index: 6, kind: input, shape index: {}]
  %s7 = inlined_call_operand.hbm [shape: f32[8,128], index: 7, kind: output, shape index: {0}]
  %s8 = inlined_call_operand.hbm [shape: f32[8,128], index: 8, kind: output, shape index: {1}]
  %9 = xla_tuple %s7, %s8
  %s10 = sld [smem:[#allocation0]]
  $region70: #{tpu_custom_call.1} parent=0
    _
  %s12 = ssub.s32 1, %s10
  %s13 = scalar_select 0, %s12, %s10
  $region1: #{tpu_custom_call.1} parent=0
    #allocation2 [shape = 'u8[4096]{0}', space=vmem, size = 0x1000, scoped, tag = 'input window, operand 0, single buffered']
    #allocation3 [shape = 's32[1]{0}', space=sflag, size = 0x4, scoped, tag = 'scoped memory for tpu_custom_call.1']
    #allocation4 [shape = 's32[1]{0}', space=sflag, size = 0x4, scoped, tag = 'scoped memory for tpu_custom_call.1']
    #allocation5 [shape = 'u8[4096]{0}', space=vmem, size = 0x1000, scoped, tag = 'input window, operand 1, single buffered']
    #allocation6 [shape = 's32[1]{0}', space=sflag, size = 0x4, scoped, tag = 'scoped memory for tpu_custom_call.1']
    #allocation7 [shape = 'u8[4096]{0}', space=vmem, size = 0x1000, scoped, tag = 'input window, operand 2, single buffered']
    #allocation8 [shape = 'u8[40960]{0}', space=vmem, size = 0xa000, scoped, tag = 'input window, operand 3, single buffered']
    #allocation9 [shape = 's32[1]{0}', space=sflag, size = 0x4, scoped, tag = 'scoped memory for tpu_custom_call.1']
    #allocation10 [shape = 'u8[81920]{0}', space=vmem, size = 0x14000, scoped, tag = 'input window, operand 4, single buffered']
    #allocation11 [shape = 'u8[65536]{0}', space=vmem, size = 0x10000, scoped, tag = 'input window, operand 6, single buffered']
    #allocation12 [shape = 's32[1]{0}', space=sflag, size = 0x4, scoped, tag = 'scoped memory for tpu_custom_call.1']
    #allocation13 [shape = 'u8[4096]{0}', space=vmem, size = 0x1000, scoped, tag = 'output window, operand 0, single buffered']
    #allocation14 [shape = 'u8[4096]{0}', space=vmem, size = 0x1000, scoped, tag = 'output window, operand 1, single buffered']
    #allocation15 [shape = 's32[1]{0}', space=sflag, size = 0x4, scoped, tag = 'scoped memory for tpu_custom_call.1']
    %14 = vsyncpa [#allocation3], 0
    %15 = vsyncpa [#allocation6], 0
    %16 = vsyncpa [#allocation9], 0
    %17 = vsyncpa [#allocation12], 0
    %18 = vsyncpa [#allocation4], 0
    %19 = vsyncpa [#allocation15], 0
    // Predicated region
    $region2: #{tpu_custom_call.1} parent=1 // pred_check
      _
    $region3: #{tpu_custom_call.1} parent=1 // pred_check_branch
      %21 = sbr.rel (0) target = $region5
    $region4: #{tpu_custom_call.1} parent=1 // pred_region
      %s23 = ssub.s32 128, 128
      %24 = vsyncadd [#allocation3], %s23
      %s26 = sshll.u32 [#allocation2], 4
      %s27 = int_to_ptr.vmem [resolvable:$true] %s26
      %29 = dma.hbm_to_vmem [thread:$0]  %s0, 128, %s27, [#allocation3]
    $region5: #{tpu_custom_call.1} parent=1 // pred_fallthru
      _
    // Predicated region
    $region6: #{tpu_custom_call.1} parent=1 // pred_check
      _
    $region7: #{tpu_custom_call.1} parent=1 // pred_check_branch
      %31 = sbr.rel (0) target = $region9
    $region8: #{tpu_custom_call.1} parent=1 // pred_region
      %s33 = ssub.s32 128, 128
      %34 = vsyncadd [#allocation6], %s33
      %s36 = sshll.u32 [#allocation5], 4
      %s37 = int_to_ptr.vmem [resolvable:$true] %s36
      %39 = dma.hbm_to_vmem [thread:$0]  %s1, 128, %s37, [#allocation6]
    $region9: #{tpu_custom_call.1} parent=1 // pred_fallthru
      _
    // Predicated region
    $region10: #{tpu_custom_call.1} parent=1 // pred_check
      _
    $region11: #{tpu_custom_call.1} parent=1 // pred_check_branch
      %41 = sbr.rel (0) target = $region13
    $region12: #{tpu_custom_call.1} parent=1 // pred_region
      %s43 = ssub.s32 128, 128
      %44 = vsyncadd [#allocation6], %s43
      %s46 = sshll.u32 [#allocation7], 4
      %s47 = int_to_ptr.vmem [resolvable:$true] %s46
      %49 = dma.hbm_to_vmem [thread:$0]  %s2, 128, %s47, [#allocation6]
    $region13: #{tpu_custom_call.1} parent=1 // pred_fallthru
      _
    // Predicated region
    $region14: #{tpu_custom_call.1} parent=1 // pred_check
      _
    $region15: #{tpu_custom_call.1} parent=1 // pred_check_branch
      %51 = sbr.rel (0) target = $region17
    $region16: #{tpu_custom_call.1} parent=1 // pred_region
      %s53 = ssub.s32 1280, 1280
      %54 = vsyncadd [#allocation9], %s53
      %s55 = sshll.u32 [#allocation8], 4
      %s56 = int_to_ptr.vmem [resolvable:$true] %s55
      %61 = dma.hbm_to_vmem [thread:$0]  %s3, 1280, %s56, [#allocation9], 640, 640, 40
    $region17: #{tpu_custom_call.1} parent=1 // pred_fallthru
      _
    // Predicated region
    $region18: #{tpu_custom_call.1} parent=1 // pred_check
      _
    $region19: #{tpu_custom_call.1} parent=1 // pred_check_branch
      %63 = sbr.rel (0) target = $region21
    $region20: #{tpu_custom_call.1} parent=1 // pred_region
      %s65 = ssub.s32 2560, 2560
      %66 = vsyncadd [#allocation9], %s65
      %s67 = sshll.u32 [#allocation10], 4
      %s68 = int_to_ptr.vmem [resolvable:$true] %s67
      %73 = dma.hbm_to_vmem [thread:$0]  %s4, 2560, %s68, [#allocation9], 640, 640, 40
    $region21: #{tpu_custom_call.1} parent=1 // pred_fallthru
      _
    // Predicated region
    $region22: #{tpu_custom_call.1} parent=1 // pred_check
      _
    $region23: #{tpu_custom_call.1} parent=1 // pred_check_branch
      %75 = sbr.rel (0) target = $region25
    $region24: #{tpu_custom_call.1} parent=1 // pred_region
      _
    $region25: #{tpu_custom_call.1} parent=1 // pred_fallthru
      _
    // Predicated region
    $region26: #{tpu_custom_call.1} parent=1 // pred_check
      _
    $region27: #{tpu_custom_call.1} parent=1 // pred_check_branch
      %77 = sbr.rel (0) target = $region29
    $region28: #{tpu_custom_call.1} parent=1 // pred_region
      %s79 = ssub.s32 2048, 2048
      %80 = vsyncadd [#allocation12], %s79
      %s81 = sshll.u32 [#allocation11], 4
      %s82 = int_to_ptr.vmem [resolvable:$true] %s81
      %87 = dma.hbm_to_vmem [thread:$0]  %s6, 2048, %s82, [#allocation12], 128, 128, 8
    $region29: #{tpu_custom_call.1} parent=1 // pred_fallthru
      _
    // Predicated region
    $region30: #{tpu_custom_call.1} parent=1 // pred_check
      _
    $region31: #{tpu_custom_call.1} parent=1 // pred_check_branch
      %89 = sbr.rel (0) target = $region33
    $region32: #{tpu_custom_call.1} parent=1 // pred_region
      %90 = dma.done [#allocation3], 128
    $region33: #{tpu_custom_call.1} parent=1 // pred_fallthru
      _
    // Predicated region
    $region34: #{tpu_custom_call.1} parent=1 // pred_check
      _
    $region35: #{tpu_custom_call.1} parent=1 // pred_check_branch
      %92 = sbr.rel (0) target = $region37
    $region36: #{tpu_custom_call.1} parent=1 // pred_region
      %93 = dma.done [#allocation6], 128
    $region37: #{tpu_custom_call.1} parent=1 // pred_fallthru
      _
    // Predicated region
    $region38: #{tpu_custom_call.1} parent=1 // pred_check
      _
    $region39: #{tpu_custom_call.1} parent=1 // pred_check_branch
      %95 = sbr.rel (0) target = $region41
    $region40: #{tpu_custom_call.1} parent=1 // pred_region
      %96 = dma.done [#allocation6], 128
    $region41: #{tpu_custom_call.1} parent=1 // pred_fallthru
      _
    // Predicated region
    $region42: #{tpu_custom_call.1} parent=1 // pred_check
      _
    $region43: #{tpu_custom_call.1} parent=1 // pred_check_branch
      %98 = sbr.rel (0) target = $region45
    $region44: #{tpu_custom_call.1} parent=1 // pred_region
      %99 = dma.done [#allocation9], 1280
    $region45: #{tpu_custom_call.1} parent=1 // pred_fallthru
      _
    // Predicated region
    $region46: #{tpu_custom_call.1} parent=1 // pred_check
      _
    $region47: #{tpu_custom_call.1} parent=1 // pred_check_branch
      %101 = sbr.rel (0) target = $region49
    $region48: #{tpu_custom_call.1} parent=1 // pred_region
      %102 = dma.done [#allocation9], 2560
    $region49: #{tpu_custom_call.1} parent=1 // pred_fallthru
      _
    // Predicated region
    $region50: #{tpu_custom_call.1} parent=1 // pred_check
      _
    $region51: #{tpu_custom_call.1} parent=1 // pred_check_branch
      %104 = sbr.rel (0) target = $region53
    $region52: #{tpu_custom_call.1} parent=1 // pred_region
      %105 = dma.done [#allocation12], 2048
    $region53: #{tpu_custom_call.1} parent=1 // pred_fallthru
      _
    %v106 = vld [vmem:[#allocation2] sm:$0xff]
    %v107 = vld [vmem:[#allocation8] sm:$0xff]
    %v108 = vld [vmem:[#allocation8 + $0x8] sm:$0xff]
    %v109 = vld [vmem:[#allocation8 + $0x10] sm:$0xff]
    %v110 = vld [vmem:[#allocation8 + $0x18] sm:$0xff]
    %v111 = vld [vmem:[#allocation8 + $0x20] sm:$0xff]
    %v112 = vld [vmem:[#allocation8 + $0x28] sm:$0xff]
    %v113 = vld [vmem:[#allocation8 + $0x30] sm:$0xff]
    %v114 = vld [vmem:[#allocation8 + $0x38] sm:$0xff]
    %v115 = vld [vmem:[#allocation8 + $0x40] sm:$0xff]
    %v116 = vld [vmem:[#allocation8 + $0x48] sm:$0xff]
    %v117 = vld [vmem:[#allocation5] sm:$0xff]
    %v118 = vld [vmem:[#allocation10] sm:$0xff]
    %v119 = vld [vmem:[#allocation10 + $0x8] sm:$0xff]
    %v120 = vld [vmem:[#allocation10 + $0x10] sm:$0xff]
    %v121 = vld [vmem:[#allocation10 + $0x18] sm:$0xff]
    %v122 = vld [vmem:[#allocation10 + $0x20] sm:$0xff]
    %v123 = vld [vmem:[#allocation10 + $0x28] sm:$0xff]
    %v124 = vld [vmem:[#allocation10 + $0x30] sm:$0xff]
    %v125 = vld [vmem:[#allocation10 + $0x38] sm:$0xff]
    %v126 = vld [vmem:[#allocation10 + $0x40] sm:$0xff]
    %v127 = vld [vmem:[#allocation10 + $0x48] sm:$0xff]
    %v128 = vld [vmem:[#allocation10 + $0x50] sm:$0xff]
    %v129 = vld [vmem:[#allocation10 + $0x58] sm:$0xff]
    %v130 = vld [vmem:[#allocation10 + $0x60] sm:$0xff]
    %v131 = vld [vmem:[#allocation10 + $0x68] sm:$0xff]
    %v132 = vld [vmem:[#allocation10 + $0x70] sm:$0xff]
    %v133 = vld [vmem:[#allocation10 + $0x78] sm:$0xff]
    %v134 = vld [vmem:[#allocation10 + $0x80] sm:$0xff]
    %v135 = vld [vmem:[#allocation10 + $0x88] sm:$0xff]
    %v136 = vld [vmem:[#allocation10 + $0x90] sm:$0xff]
    %v137 = vld [vmem:[#allocation10 + $0x98] sm:$0xff]
    %vm138 = vcmask 261120
    %v140 = vsel %vm138, %v117, 0
    %142 = vmatprep.subr.mxu0 %v119
    %143 = vmatpush1.msra.mxu0 %v118
    %144 = vmatprep.subr.mxu0 %v124
    %145 = vmatpush1.msra.mxu0 %v123
    %146 = vmatprep.subr.mxu0 %v129
    %147 = vmatpush1.msra.mxu0 %v128
    %148 = vmatprep.subr.mxu0 %v134
    %149 = vmatpush1.msra.mxu0 %v133
    %150 = vmatprep.subr.mxu0 0.0
    %151 = vmatpush1.msra.mxu0 0.0
    %152 = vmatprep.subr.mxu0 0.0
    %153 = vmatpush1.msra.mxu0 0.0
    %154 = vmatprep.subr.mxu0 0.0
    %155 = vmatpush1.msra.mxu0 0.0
    %156 = vmatprep.subr.mxu0 0.0
    %157 = vmatpush1.msra.mxu0 0.0
    %158 = vmatprep.subr.mxu0 0.0
    %159 = vmatpush1.msra.mxu0 0.0
    %160 = vmatprep.subr.mxu0 0.0
    %161 = vmatpush1.msra.mxu0 0.0
    %162 = vmatprep.subr.mxu0 0.0
    %163 = vmatpush1.msra.mxu0 0.0
    %164 = vmatprep.subr.mxu0 0.0
    %165 = vmatpush1.msra.mxu0 0.0
    %166 = vmatprep.subr.mxu0 0.0
    %167 = vmatpush1.msra.mxu0 0.0
    %168 = vmatprep.subr.mxu0 0.0
    %169 = vmatpush1.msra.mxu0 0.0
    %170 = vmatprep.subr.mxu0 0.0
    %171 = vmatpush1.msra.mxu0 0.0
    %172 = vmatprep.subr.mxu0 0.0
    %173 = vmatpush1.msra.mxu0 0.0
    %174 = vmatprep.subr.mxu0 0.0
    %175 = vmatpush1.msra.mxu0 0.0
    %176 = vmatprep.subr.mxu0 0.0
    %177 = vmatpush1.msra.mxu0 0.0
    %178 = vmatprep.subr.mxu0 0.0
    %179 = vmatpush1.msra.mxu0 0.0
    %180 = vmatprep.subr.mxu0 0.0
    %181 = vmatpush1.msra.mxu0 0.0
    %182 = vmatprep.subr.mxu0 0.0
    %183 = vmatpush1.msra.mxu0 0.0
    %184 = vmatprep.subr.mxu0 0.0
    %185 = vmatpush1.msra.mxu0 0.0
    %186 = vmatprep.subr.mxu0 0.0
    %187 = vmatpush1.msra.mxu0 0.0
    %188 = vmatprep.subr.mxu0 0.0
    %189 = vmatpush1.msra.mxu0 0.0
    %190 = vmatprep.subr.mxu0 0.0
    %191 = vmatpush1.msra.mxu0 0.0
    %192 = vmatprep.subr.mxu0 0.0
    %193 = vmatpush1.msra.mxu0 0.0
    %194 = vmatprep.subr.mxu0 0.0
    %195 = vmatpush1.msra.mxu0 0.0
    %196 = vmatprep.subr.mxu0 0.0
    %197 = vmatpush1.msra.mxu0 0.0
    %198 = vmatprep.subr.mxu0 0.0
    %199 = vmatpush1.msra.mxu0 0.0
    %200 = vmatprep.subr.mxu0 0.0
    %201 = vmatpush1.msra.mxu0 0.0
    %202 = vmatprep.subr.mxu0 0.0
    %203 = vmatpush1.msra.mxu0 0.0
    %204 = vmatprep.subr.mxu0 0.0
    %205 = vmatpush1.msra.mxu0 0.0
    %206 = vmatprep.mubr.f32.mxu0 0.0
    %207 = vmatmul.mubr.f32.gmra.mrb[0].mxu0 %v140
    %v208 = vpop.f32.mrb[0].mxu0
    %v209 = vadd.f32 0.0, %v208
    %v210 = vpop.f32.mrb[0].mxu0
    %v211 = vadd.f32 0.0, %v210
    %212 = vdwg.mxu0
    %213 = vmatprep.subr.mxu0 %v121
    %214 = vmatpush1.msra.mxu0 %v120
    %215 = vmatprep.subr.mxu0 %v126
    %216 = vmatpush1.msra.mxu0 %v125
    %217 = vmatprep.subr.mxu0 %v131
    %218 = vmatpush1.msra.mxu0 %v130
    %219 = vmatprep.subr.mxu0 %v136
    %220 = vmatpush1.msra.mxu0 %v135
    %221 = vmatprep.subr.mxu0 0.0
    %222 = vmatpush1.msra.mxu0 0.0
    %223 = vmatprep.subr.mxu0 0.0
    %224 = vmatpush1.msra.mxu0 0.0
    %225 = vmatprep.subr.mxu0 0.0
    %226 = vmatpush1.msra.mxu0 0.0
    %227 = vmatprep.subr.mxu0 0.0
    %228 = vmatpush1.msra.mxu0 0.0
    %229 = vmatprep.subr.mxu0 0.0
    %230 = vmatpush1.msra.mxu0 0.0
    %231 = vmatprep.subr.mxu0 0.0
    %232 = vmatpush1.msra.mxu0 0.0
    %233 = vmatprep.subr.mxu0 0.0
    %234 = vmatpush1.msra.mxu0 0.0
    %235 = vmatprep.subr.mxu0 0.0
    %236 = vmatpush1.msra.mxu0 0.0
    %237 = vmatprep.subr.mxu0 0.0
    %238 = vmatpush1.msra.mxu0 0.0
    %239 = vmatprep.subr.mxu0 0.0
    %240 = vmatpush1.msra.mxu0 0.0
    %241 = vmatprep.subr.mxu0 0.0
    %242 = vmatpush1.msra.mxu0 0.0
    %243 = vmatprep.subr.mxu0 0.0
    %244 = vmatpush1.msra.mxu0 0.0
    %245 = vmatprep.subr.mxu0 0.0
    %246 = vmatpush1.msra.mxu0 0.0
    %247 = vmatprep.subr.mxu0 0.0
    %248 = vmatpush1.msra.mxu0 0.0
    %249 = vmatprep.subr.mxu0 0.0
    %250 = vmatpush1.msra.mxu0 0.0
    %251 = vmatprep.subr.mxu0 0.0
    %252 = vmatpush1.msra.mxu0 0.0
    %253 = vmatprep.subr.mxu0 0.0
    %254 = vmatpush1.msra.mxu0 0.0
    %255 = vmatprep.subr.mxu0 0.0
    %256 = vmatpush1.msra.mxu0 0.0
    %257 = vmatprep.subr.mxu0 0.0
    %258 = vmatpush1.msra.mxu0 0.0
    %259 = vmatprep.subr.mxu0 0.0
    %260 = vmatpush1.msra.mxu0 0.0
    %261 = vmatprep.subr.mxu0 0.0
    %262 = vmatpush1.msra.mxu0 0.0
    %263 = vmatprep.subr.mxu0 0.0
    %264 = vmatpush1.msra.mxu0 0.0
    %265 = vmatprep.subr.mxu0 0.0
    %266 = vmatpush1.msra.mxu0 0.0
    %267 = vmatprep.subr.mxu0 0.0
    %268 = vmatpush1.msra.mxu0 0.0
    %269 = vmatprep.subr.mxu0 0.0
    %270 = vmatpush1.msra.mxu0 0.0
    %271 = vmatprep.subr.mxu0 0.0
    %272 = vmatpush1.msra.mxu0 0.0
    %273 = vmatprep.subr.mxu0 0.0
    %274 = vmatpush1.msra.mxu0 0.0
    %275 = vmatprep.subr.mxu0 0.0
    %276 = vmatpush1.msra.mxu0 0.0
    %277 = vmatprep.mubr.f32.mxu0 0.0
    %278 = vmatmul.mubr.f32.gmra.mrb[0].mxu0 %v140
    %v279 = vpop.f32.mrb[0].mxu0
    %v280 = vadd.f32 0.0, %v279
    %v281 = vpop.f32.mrb[0].mxu0
    %v282 = vadd.f32 0.0, %v281
    %283 = vdwg.mxu0
    %284 = vmatprep.subr.mxu0 0.0
    %285 = vmatpush1.msra.mxu0 %v122
    %286 = vmatprep.subr.mxu0 0.0
    %287 = vmatpush1.msra.mxu0 %v127
    %288 = vmatprep.subr.mxu0 0.0
    %289 = vmatpush1.msra.mxu0 %v132
    %290 = vmatprep.subr.mxu0 0.0
    %291 = vmatpush1.msra.mxu0 %v137
    %292 = vmatprep.subr.mxu0 0.0
    %293 = vmatpush1.msra.mxu0 0.0
    %294 = vmatprep.subr.mxu0 0.0
    %295 = vmatpush1.msra.mxu0 0.0
    %296 = vmatprep.subr.mxu0 0.0
    %297 = vmatpush1.msra.mxu0 0.0
    %298 = vmatprep.subr.mxu0 0.0
    %299 = vmatpush1.msra.mxu0 0.0
    %300 = vmatprep.subr.mxu0 0.0
    %301 = vmatpush1.msra.mxu0 0.0
    %302 = vmatprep.subr.mxu0 0.0
    %303 = vmatpush1.msra.mxu0 0.0
    %304 = vmatprep.subr.mxu0 0.0
    %305 = vmatpush1.msra.mxu0 0.0
    %306 = vmatprep.subr.mxu0 0.0
    %307 = vmatpush1.msra.mxu0 0.0
    %308 = vmatprep.subr.mxu0 0.0
    %309 = vmatpush1.msra.mxu0 0.0
    %310 = vmatprep.subr.mxu0 0.0
    %311 = vmatpush1.msra.mxu0 0.0
    %312 = vmatprep.subr.mxu0 0.0
    %313 = vmatpush1.msra.mxu0 0.0
    %314 = vmatprep.subr.mxu0 0.0
    %315 = vmatpush1.msra.mxu0 0.0
    %316 = vmatprep.subr.mxu0 0.0
    %317 = vmatpush1.msra.mxu0 0.0
    %318 = vmatprep.subr.mxu0 0.0
    %319 = vmatpush1.msra.mxu0 0.0
    %320 = vmatprep.subr.mxu0 0.0
    %321 = vmatpush1.msra.mxu0 0.0
    %322 = vmatprep.subr.mxu0 0.0
    %323 = vmatpush1.msra.mxu0 0.0
    %324 = vmatprep.subr.mxu0 0.0
    %325 = vmatpush1.msra.mxu0 0.0
    %326 = vmatprep.subr.mxu0 0.0
    %327 = vmatpush1.msra.mxu0 0.0
    %328 = vmatprep.subr.mxu0 0.0
    %329 = vmatpush1.msra.mxu0 0.0
    %330 = vmatprep.subr.mxu0 0.0
    %331 = vmatpush1.msra.mxu0 0.0
    %332 = vmatprep.subr.mxu0 0.0
    %333 = vmatpush1.msra.mxu0 0.0
    %334 = vmatprep.subr.mxu0 0.0
    %335 = vmatpush1.msra.mxu0 0.0
    %336 = vmatprep.subr.mxu0 0.0
    %337 = vmatpush1.msra.mxu0 0.0
    %338 = vmatprep.subr.mxu0 0.0
    %339 = vmatpush1.msra.mxu0 0.0
    %340 = vmatprep.subr.mxu0 0.0
    %341 = vmatpush1.msra.mxu0 0.0
    %342 = vmatprep.subr.mxu0 0.0
    %343 = vmatpush1.msra.mxu0 0.0
    %344 = vmatprep.subr.mxu0 0.0
    %345 = vmatpush1.msra.mxu0 0.0
    %346 = vmatprep.subr.mxu0 0.0
    %347 = vmatpush1.msra.mxu0 0.0
    %348 = vmatprep.mubr.f32.mxu0 0.0
    %349 = vmatmul.mubr.f32.gmra.mrb[0].mxu0 %v140
    %v350 = vpop.f32.mrb[0].mxu0
    %v351 = vadd.f32 0.0, %v350
    %v352 = vpop.f32.mrb[0].mxu0
    %353 = vdwg.mxu0
    %vm354 = vcmask 130048
    %v356 = vsel %vm354, %v106, 0
    %358 = vmatprep.subr.mxu0 %v108
    %359 = vmatpush1.msra.mxu0 %v107
    %360 = vmatprep.subr.mxu0 %v113
    %361 = vmatpush1.msra.mxu0 %v112
    %362 = vmatprep.subr.mxu0 0.0
    %363 = vmatpush1.msra.mxu0 0.0
    %364 = vmatprep.subr.mxu0 0.0
    %365 = vmatpush1.msra.mxu0 0.0
    %366 = vmatprep.subr.mxu0 0.0
    %367 = vmatpush1.msra.mxu0 0.0
    %368 = vmatprep.subr.mxu0 0.0
    %369 = vmatpush1.msra.mxu0 0.0
    %370 = vmatprep.subr.mxu0 0.0
    %371 = vmatpush1.msra.mxu0 0.0
    %372 = vmatprep.subr.mxu0 0.0
    %373 = vmatpush1.msra.mxu0 0.0
    %374 = vmatprep.subr.mxu0 0.0
    %375 = vmatpush1.msra.mxu0 0.0
    %376 = vmatprep.subr.mxu0 0.0
    %377 = vmatpush1.msra.mxu0 0.0
    %378 = vmatprep.subr.mxu0 0.0
    %379 = vmatpush1.msra.mxu0 0.0
    %380 = vmatprep.subr.mxu0 0.0
    %381 = vmatpush1.msra.mxu0 0.0
    %382 = vmatprep.subr.mxu0 0.0
    %383 = vmatpush1.msra.mxu0 0.0
    %384 = vmatprep.subr.mxu0 0.0
    %385 = vmatpush1.msra.mxu0 0.0
    %386 = vmatprep.subr.mxu0 0.0
    %387 = vmatpush1.msra.mxu0 0.0
    %388 = vmatprep.subr.mxu0 0.0
    %389 = vmatpush1.msra.mxu0 0.0
    %390 = vmatprep.subr.mxu0 0.0
    %391 = vmatpush1.msra.mxu0 0.0
    %392 = vmatprep.subr.mxu0 0.0
    %393 = vmatpush1.msra.mxu0 0.0
    %394 = vmatprep.subr.mxu0 0.0
    %395 = vmatpush1.msra.mxu0 0.0
    %396 = vmatprep.subr.mxu0 0.0
    %397 = vmatpush1.msra.mxu0 0.0
    %398 = vmatprep.subr.mxu0 0.0
    %399 = vmatpush1.msra.mxu0 0.0
    %400 = vmatprep.subr.mxu0 0.0
    %401 = vmatpush1.msra.mxu0 0.0
    %402 = vmatprep.subr.mxu0 0.0
    %403 = vmatpush1.msra.mxu0 0.0
    %404 = vmatprep.subr.mxu0 0.0
    %405 = vmatpush1.msra.mxu0 0.0
    %406 = vmatprep.subr.mxu0 0.0
    %407 = vmatpush1.msra.mxu0 0.0
    %408 = vmatprep.subr.mxu0 0.0
    %409 = vmatpush1.msra.mxu0 0.0
    %410 = vmatprep.subr.mxu0 0.0
    %411 = vmatpush1.msra.mxu0 0.0
    %412 = vmatprep.subr.mxu0 0.0
    %413 = vmatpush1.msra.mxu0 0.0
    %414 = vmatprep.subr.mxu0 0.0
    %415 = vmatpush1.msra.mxu0 0.0
    %416 = vmatprep.subr.mxu0 0.0
    %417 = vmatpush1.msra.mxu0 0.0
    %418 = vmatprep.subr.mxu0 0.0
    %419 = vmatpush1.msra.mxu0 0.0
    %420 = vmatprep.subr.mxu0 0.0
    %421 = vmatpush1.msra.mxu0 0.0
    %422 = vmatprep.mubr.f32.mxu0 0.0
    %423 = vmatmul.mubr.f32.gmra.mrb[0].mxu0 %v356
    %v424 = vpop.f32.mrb[0].mxu0
    %v425 = vadd.f32 %v209, %v424
    %v426 = vpop.f32.mrb[0].mxu0
    %v427 = vadd.f32 %v211, %v426
    %428 = vdwg.mxu0
    %429 = vmatprep.subr.mxu0 %v110
    %430 = vmatpush1.msra.mxu0 %v109
    %431 = vmatprep.subr.mxu0 %v115
    %432 = vmatpush1.msra.mxu0 %v114
    %433 = vmatprep.subr.mxu0 0.0
    %434 = vmatpush1.msra.mxu0 0.0
    %435 = vmatprep.subr.mxu0 0.0
    %436 = vmatpush1.msra.mxu0 0.0
    %437 = vmatprep.subr.mxu0 0.0
    %438 = vmatpush1.msra.mxu0 0.0
    %439 = vmatprep.subr.mxu0 0.0
    %440 = vmatpush1.msra.mxu0 0.0
    %441 = vmatprep.subr.mxu0 0.0
    %442 = vmatpush1.msra.mxu0 0.0
    %443 = vmatprep.subr.mxu0 0.0
    %444 = vmatpush1.msra.mxu0 0.0
    %445 = vmatprep.subr.mxu0 0.0
    %446 = vmatpush1.msra.mxu0 0.0
    %447 = vmatprep.subr.mxu0 0.0
    %448 = vmatpush1.msra.mxu0 0.0
    %449 = vmatprep.subr.mxu0 0.0
    %450 = vmatpush1.msra.mxu0 0.0
    %451 = vmatprep.subr.mxu0 0.0
    %452 = vmatpush1.msra.mxu0 0.0
    %453 = vmatprep.subr.mxu0 0.0
    %454 = vmatpush1.msra.mxu0 0.0
    %455 = vmatprep.subr.mxu0 0.0
    %456 = vmatpush1.msra.mxu0 0.0
    %457 = vmatprep.subr.mxu0 0.0
    %458 = vmatpush1.msra.mxu0 0.0
    %459 = vmatprep.subr.mxu0 0.0
    %460 = vmatpush1.msra.mxu0 0.0
    %461 = vmatprep.subr.mxu0 0.0
    %462 = vmatpush1.msra.mxu0 0.0
    %463 = vmatprep.subr.mxu0 0.0
    %464 = vmatpush1.msra.mxu0 0.0
    %465 = vmatprep.subr.mxu0 0.0
    %466 = vmatpush1.msra.mxu0 0.0
    %467 = vmatprep.subr.mxu0 0.0
    %468 = vmatpush1.msra.mxu0 0.0
    %469 = vmatprep.subr.mxu0 0.0
    %470 = vmatpush1.msra.mxu0 0.0
    %471 = vmatprep.subr.mxu0 0.0
    %472 = vmatpush1.msra.mxu0 0.0
    %473 = vmatprep.subr.mxu0 0.0
    %474 = vmatpush1.msra.mxu0 0.0
    %475 = vmatprep.subr.mxu0 0.0
    %476 = vmatpush1.msra.mxu0 0.0
    %477 = vmatprep.subr.mxu0 0.0
    %478 = vmatpush1.msra.mxu0 0.0
    %479 = vmatprep.subr.mxu0 0.0
    %480 = vmatpush1.msra.mxu0 0.0
    %481 = vmatprep.subr.mxu0 0.0
    %482 = vmatpush1.msra.mxu0 0.0
    %483 = vmatprep.subr.mxu0 0.0
    %484 = vmatpush1.msra.mxu0 0.0
    %485 = vmatprep.subr.mxu0 0.0
    %486 = vmatpush1.msra.mxu0 0.0
    %487 = vmatprep.subr.mxu0 0.0
    %488 = vmatpush1.msra.mxu0 0.0
    %489 = vmatprep.subr.mxu0 0.0
    %490 = vmatpush1.msra.mxu0 0.0
    %491 = vmatprep.subr.mxu0 0.0
    %492 = vmatpush1.msra.mxu0 0.0
    %493 = vmatprep.mubr.f32.mxu0 0.0
    %494 = vmatmul.mubr.f32.gmra.mrb[0].mxu0 %v356
    %v495 = vpop.f32.mrb[0].mxu0
    %v496 = vadd.f32 %v280, %v495
    %v497 = vpop.f32.mrb[0].mxu0
    %v498 = vadd.f32 %v282, %v497
    %499 = vdwg.mxu0
    %500 = vmatprep.subr.mxu0 0.0
    %501 = vmatpush1.msra.mxu0 %v111
    %502 = vmatprep.subr.mxu0 0.0
    %503 = vmatpush1.msra.mxu0 %v116
    %504 = vmatprep.subr.mxu0 0.0
    %505 = vmatpush1.msra.mxu0 0.0
    %506 = vmatprep.subr.mxu0 0.0
    %507 = vmatpush1.msra.mxu0 0.0
    %508 = vmatprep.subr.mxu0 0.0
    %509 = vmatpush1.msra.mxu0 0.0
    %510 = vmatprep.subr.mxu0 0.0
    %511 = vmatpush1.msra.mxu0 0.0
    %512 = vmatprep.subr.mxu0 0.0
    %513 = vmatpush1.msra.mxu0 0.0
    %514 = vmatprep.subr.mxu0 0.0
    %515 = vmatpush1.msra.mxu0 0.0
    %516 = vmatprep.subr.mxu0 0.0
    %517 = vmatpush1.msra.mxu0 0.0
    %518 = vmatprep.subr.mxu0 0.0
    %519 = vmatpush1.msra.mxu0 0.0
    %520 = vmatprep.subr.mxu0 0.0
    %521 = vmatpush1.msra.mxu0 0.0
    %522 = vmatprep.subr.mxu0 0.0
    %523 = vmatpush1.msra.mxu0 0.0
    %524 = vmatprep.subr.mxu0 0.0
    %525 = vmatpush1.msra.mxu0 0.0
    %526 = vmatprep.subr.mxu0 0.0
    %527 = vmatpush1.msra.mxu0 0.0
    %528 = vmatprep.subr.mxu0 0.0
    %529 = vmatpush1.msra.mxu0 0.0
    %530 = vmatprep.subr.mxu0 0.0
    %531 = vmatpush1.msra.mxu0 0.0
    %532 = vmatprep.subr.mxu0 0.0
    %533 = vmatpush1.msra.mxu0 0.0
    %534 = vmatprep.subr.mxu0 0.0
    %535 = vmatpush1.msra.mxu0 0.0
    %536 = vmatprep.subr.mxu0 0.0
    %537 = vmatpush1.msra.mxu0 0.0
    %538 = vmatprep.subr.mxu0 0.0
    %539 = vmatpush1.msra.mxu0 0.0
    %540 = vmatprep.subr.mxu0 0.0
    %541 = vmatpush1.msra.mxu0 0.0
    %542 = vmatprep.subr.mxu0 0.0
    %543 = vmatpush1.msra.mxu0 0.0
    %544 = vmatprep.subr.mxu0 0.0
    %545 = vmatpush1.msra.mxu0 0.0
    %546 = vmatprep.subr.mxu0 0.0
    %547 = vmatpush1.msra.mxu0 0.0
    %548 = vmatprep.subr.mxu0 0.0
    %549 = vmatpush1.msra.mxu0 0.0
    %550 = vmatprep.subr.mxu0 0.0
    %551 = vmatpush1.msra.mxu0 0.0
    %552 = vmatprep.subr.mxu0 0.0
    %553 = vmatpush1.msra.mxu0 0.0
    %554 = vmatprep.subr.mxu0 0.0
    %555 = vmatpush1.msra.mxu0 0.0
    %556 = vmatprep.subr.mxu0 0.0
    %557 = vmatpush1.msra.mxu0 0.0
    %558 = vmatprep.subr.mxu0 0.0
    %559 = vmatpush1.msra.mxu0 0.0
    %560 = vmatprep.subr.mxu0 0.0
    %561 = vmatpush1.msra.mxu0 0.0
    %562 = vmatprep.subr.mxu0 0.0
    %563 = vmatpush1.msra.mxu0 0.0
    %564 = vmatprep.mubr.f32.mxu0 0.0
    %565 = vmatmul.mubr.f32.gmra.mrb[0].mxu0 %v356
    %v566 = vpop.f32.mrb[0].mxu0
    %v567 = vadd.f32 %v351, %v566
    %v568 = vpop.f32.mrb[0].mxu0
    %569 = vdwg.mxu0
    %v570 = vld [vmem:[%s5] sm:$0x1f]
    %v572 = vlaneseq
    %v573 = vshrl.u32 %v572, 7
    %v574 = vsub.s32 0, %v573
    %v575 = vrot.slane %v570, %v574
    %v576 = vlaneseq
    %v577 = vshrl.u32 %v576, 7
    %v578 = vsub.s32 1, %v577
    %v579 = vrot.slane %v570, %v578
    %v580 = vlaneseq
    %v581 = vshrl.u32 %v580, 7
    %v582 = vsub.s32 2, %v581
    %v583 = vrot.slane %v570, %v582
    %v584 = vlaneseq
    %v585 = vshrl.u32 %v584, 7
    %v586 = vsub.s32 3, %v585
    %v587 = vrot.slane %v570, %v586
    %v588 = vlaneseq
    %v589 = vshrl.u32 %v588, 7
    %v590 = vsub.s32 4, %v589
    %v591 = vrot.slane %v570, %v590
    %v597 = vadd.f32 %v425, %v575
    %v598 = vadd.f32 %v427, %v579
    %v599 = vadd.f32 %v496, %v583
    %v600 = vadd.f32 %v498, %v587
    %v601 = vadd.f32 %v567, %v591
    %v602 = vlaneseq
    %v603 = vand.u32 %v602, 127
    %vm604 = vcmp.lt.s32.totalorder %v603, 8
    %v605 = vsel %vm604, %v597, -1e+30
    %vm606 = vcmp.ge.s32.totalorder %v603, 8
    %vm607 = vcmp.lt.s32.totalorder %v603, 16
    %vm608 = vmand %vm606, %vm607
    %v609 = vsel %vm608, %v597, -1e+30
    %610 = vmax.xlane.f32.xlu0 %v605
    %v611 = vpop.xlane.xlu0 %610
    %612 = vmax.xlane.f32.xlu0 %v609
    %v613 = vpop.xlane.xlu0 %612
    %v614 = vsub.f32 %v605, %v611
    %v615 = vsub.f32 %v609, %v613
    %v616 = vmul.f32 %v614, 1.442695
    %v617 = vpow.pop %v616
    %v618 = vmul.f32 %v615, 1.442695
    %v619 = vpow.pop %v618
    %620 = vadd.xlane.f32.xlu0 %v617
    %v621 = vpop.xlane.xlu0 %620
    %622 = vadd.xlane.f32.xlu0 %v619
    %v623 = vpop.xlane.xlu0 %622
    %v624 = vrcp.pop %v621
    %v625 = vmul.f32 %v617, %v624
    %v626 = vrcp.pop %v623
    %v627 = vmul.f32 %v619, %v626
    %v628 = vld [vmem:[#allocation11] sm:$0xff]
    %v629 = vld [vmem:[#allocation11 + $0x8] sm:$0xff]
    %v630 = vld [vmem:[#allocation11 + $0x10] sm:$0xff]
    %v631 = vld [vmem:[#allocation11 + $0x18] sm:$0xff]
    %v632 = vld [vmem:[#allocation11 + $0x20] sm:$0xff]
    %v633 = vld [vmem:[#allocation11 + $0x28] sm:$0xff]
    %v634 = vld [vmem:[#allocation11 + $0x30] sm:$0xff]
    %v635 = vld [vmem:[#allocation11 + $0x38] sm:$0xff]
    %v636 = vld [vmem:[#allocation11 + $0x40] sm:$0xff]
    %v637 = vld [vmem:[#allocation11 + $0x48] sm:$0xff]
    %v638 = vld [vmem:[#allocation11 + $0x50] sm:$0xff]
    %v639 = vld [vmem:[#allocation11 + $0x58] sm:$0xff]
    %v640 = vld [vmem:[#allocation11 + $0x60] sm:$0xff]
    %v641 = vld [vmem:[#allocation11 + $0x68] sm:$0xff]
    %v642 = vld [vmem:[#allocation11 + $0x70] sm:$0xff]
    %v643 = vld [vmem:[#allocation11 + $0x78] sm:$0xff]
    %644 = vmatprep.subr.mxu0 0.0
    %645 = vmatpush1.msra.mxu0 %v628
    %646 = vmatprep.subr.mxu0 0.0
    %647 = vmatpush1.msra.mxu0 %v629
    %648 = vmatprep.subr.mxu0 0.0
    %649 = vmatpush1.msra.mxu0 %v630
    %650 = vmatprep.subr.mxu0 0.0
    %651 = vmatpush1.msra.mxu0 %v631
    %652 = vmatprep.subr.mxu0 0.0
    %653 = vmatpush1.msra.mxu0 %v632
    %654 = vmatprep.subr.mxu0 0.0
    %655 = vmatpush1.msra.mxu0 %v633
    %656 = vmatprep.subr.mxu0 0.0
    %657 = vmatpush1.msra.mxu0 %v634
    %658 = vmatprep.subr.mxu0 0.0
    %659 = vmatpush1.msra.mxu0 %v635
    %660 = vmatprep.subr.mxu0 0.0
    %661 = vmatpush1.msra.mxu0 %v636
    %662 = vmatprep.subr.mxu0 0.0
    %663 = vmatpush1.msra.mxu0 %v637
    %664 = vmatprep.subr.mxu0 0.0
    %665 = vmatpush1.msra.mxu0 %v638
    %666 = vmatprep.subr.mxu0 0.0
    %667 = vmatpush1.msra.mxu0 %v639
    %668 = vmatprep.subr.mxu0 0.0
    %669 = vmatpush1.msra.mxu0 %v640
    %670 = vmatprep.subr.mxu0 0.0
    %671 = vmatpush1.msra.mxu0 %v641
    %672 = vmatprep.subr.mxu0 0.0
    %673 = vmatpush1.msra.mxu0 %v642
    %674 = vmatprep.subr.mxu0 0.0
    %675 = vmatpush1.msra.mxu0 %v643
    %676 = vmatprep.subr.mxu0 0.0
    %677 = vmatpush1.msra.mxu0 0.0
    %678 = vmatprep.subr.mxu0 0.0
    %679 = vmatpush1.msra.mxu0 0.0
    %680 = vmatprep.subr.mxu0 0.0
    %681 = vmatpush1.msra.mxu0 0.0
    %682 = vmatprep.subr.mxu0 0.0
    %683 = vmatpush1.msra.mxu0 0.0
    %684 = vmatprep.subr.mxu0 0.0
    %685 = vmatpush1.msra.mxu0 0.0
    %686 = vmatprep.subr.mxu0 0.0
    %687 = vmatpush1.msra.mxu0 0.0
    %688 = vmatprep.subr.mxu0 0.0
    %689 = vmatpush1.msra.mxu0 0.0
    %690 = vmatprep.subr.mxu0 0.0
    %691 = vmatpush1.msra.mxu0 0.0
    %692 = vmatprep.subr.mxu0 0.0
    %693 = vmatpush1.msra.mxu0 0.0
    %694 = vmatprep.subr.mxu0 0.0
    %695 = vmatpush1.msra.mxu0 0.0
    %696 = vmatprep.subr.mxu0 0.0
    %697 = vmatpush1.msra.mxu0 0.0
    %698 = vmatprep.subr.mxu0 0.0
    %699 = vmatpush1.msra.mxu0 0.0
    %700 = vmatprep.subr.mxu0 0.0
    %701 = vmatpush1.msra.mxu0 0.0
    %702 = vmatprep.subr.mxu0 0.0
    %703 = vmatpush1.msra.mxu0 0.0
    %704 = vmatprep.subr.mxu0 0.0
    %705 = vmatpush1.msra.mxu0 0.0
    %706 = vmatprep.subr.mxu0 0.0
    %707 = vmatpush1.msra.mxu0 0.0
    %708 = vmatprep.mubr.f32.mxu0 0.0
    %709 = vmatmul.mubr.f32.gmra.mrb[0].mxu0 %v625
    %v710 = vpop.f32.mrb[0].mxu0
    %v711 = vadd.f32 0.0, %v710
    %v712 = vpop.f32.mrb[0].mxu0
    %713 = vmatprep.mubr.f32.mxu0 0.0
    %714 = vmatmul.mubr.f32.gmra.mrb[0].mxu0 %v627
    %v715 = vpop.f32.mrb[0].mxu0
    %v716 = vadd.f32 0.0, %v715
    %v717 = vpop.f32.mrb[0].mxu0
    %718 = vdwg.mxu0
    %v719 = vsub.f32 1.0, %v711
    %v720 = vxor.u32 %v600, 2147483648
    %v721 = vmul.f32 %v720, 1.442695
    %v722 = vpow.pop %v721
    %v723 = vadd.f32 %v722, 1.0
    %v724 = vrcp.pop %v723
    %v725 = vmul.f32 1.0, %v724
    %v726 = vxor.u32 %v601, 2147483648
    %v727 = vmul.f32 %v726, 1.442695
    %v728 = vpow.pop %v727
    %v729 = vadd.f32 %v728, 1.0
    %v730 = vrcp.pop %v729
    %v731 = vmul.f32 1.0, %v730
    %v732 = vtanh.pop %v599
    %v733 = vxor.u32 %v598, 2147483648
    %v734 = vmul.f32 %v733, 1.442695
    %v735 = vpow.pop %v734
    %v736 = vadd.f32 %v735, 1.0
    %v737 = vrcp.pop %v736
    %v738 = vmul.f32 1.0, %v737
    %v739 = vmul.f32 %v716, %v719
    %v740 = vmul.f32 %v731, %v739
    %v741 = vsub.f32 %v716, %v739
    %v742 = vadd.f32 %v740, %v741
    %v743 = vmul.f32 %v725, %v739
    %v744 = vsub.f32 %v719, %v739
    %v745 = vadd.f32 %v743, %v744
    %v746 = vld [vmem:[#allocation7] sm:$0xff]
    %v747 = vmul.f32 %v742, %v746
    %v748 = vmul.f32 %v745, %v732
    %v749 = vadd.f32 %v747, %v748
    %v750 = vtanh.pop %v749
    %v751 = vmul.f32 %v738, %v750
    %752 = vst [vmem:[#allocation13] sm:$0xff] %v751
    %753 = vst [vmem:[#allocation14] sm:$0xff] %v749
    // Predicated region
    $region54: #{tpu_custom_call.1} parent=1 // pred_check
      _
    $region55: #{tpu_custom_call.1} parent=1 // pred_check_branch
      %755 = sbr.rel (0) target = $region57
    $region56: #{tpu_custom_call.1} parent=1 // pred_region
      %s757 = ssub.s32 128, 128
      %758 = vsyncadd [#allocation4], %s757
      %s760 = sshll.u32 [#allocation13], 4
      %s761 = int_to_ptr.vmem [resolvable:$true] %s760
      %763 = dma.vmem_to_hbm [thread:$0]  %s761, 128, %s7, [#allocation4]
    $region57: #{tpu_custom_call.1} parent=1 // pred_fallthru
      _
    // Predicated region
    $region58: #{tpu_custom_call.1} parent=1 // pred_check
      _
    $region59: #{tpu_custom_call.1} parent=1 // pred_check_branch
      %765 = sbr.rel (0) target = $region61
    $region60: #{tpu_custom_call.1} parent=1 // pred_region
      %s767 = ssub.s32 128, 128
      %768 = vsyncadd [#allocation15], %s767
      %s770 = sshll.u32 [#allocation14], 4
      %s771 = int_to_ptr.vmem [resolvable:$true] %s770
      %773 = dma.vmem_to_hbm [thread:$0]  %s771, 128, %s8, [#allocation15]
    $region61: #{tpu_custom_call.1} parent=1 // pred_fallthru
      _
    // Predicated region
    $region62: #{tpu_custom_call.1} parent=1 // pred_check
      _
    $region63: #{tpu_custom_call.1} parent=1 // pred_check_branch
      %775 = sbr.rel (0) target = $region65
    $region64: #{tpu_custom_call.1} parent=1 // pred_region
      %776 = dma.done [#allocation4], 128
    $region65: #{tpu_custom_call.1} parent=1 // pred_fallthru
      _
    // Predicated region
    $region66: #{tpu_custom_call.1} parent=1 // pred_check
      _
    $region67: #{tpu_custom_call.1} parent=1 // pred_check_branch
      %778 = sbr.rel (0) target = $region69
    $region68: #{tpu_custom_call.1} parent=1 // pred_region
      %779 = dma.done [#allocation15], 128
    $region69: #{tpu_custom_call.1} parent=1 // pred_fallthru
      _
    %780 = vsyncpa [#allocation3], 1
    %781 = vsyncpa [#allocation6], 1
    %782 = vsyncpa [#allocation9], 1
    %783 = vsyncpa [#allocation12], 1
    %784 = vsyncpa [#allocation4], 1
    %785 = vsyncpa [#allocation15], 1

</llo_original>
